<compile_context>
chip_gen: v7x
topology: tpu7x:2x2x1
jax: 0.10.0
libtpu: 0.0.40
codegen_flags: <defaults>
</compile_context>

<pallas_src>
import functools

import jax
import jax.numpy as jnp
from jax.experimental import pallas as pl


MXU_DTYPE = jnp.bfloat16  # MXU operand precision; accumulation stays float32.


def _softplus(v):
    return jnp.logaddexp(v, 0.0)


def _mxu_dot(a, w):
    """bf16 operands, f32 accumulation (used by both kernel and reference)."""
    return jnp.dot(a.astype(MXU_DTYPE), w.astype(MXU_DTYPE),
                   preferred_element_type=jnp.float32)


def gmvae_kernel(
    # inputs
    x_ref, eps_ref,
    # q(y|x) MLP
    qw1, qb1, qw2, qb2, qw3, qb3,
    # ytransform (Linear k->k)
    ytw, ytb,
    # q(z|x,y) MLP (first layer split into x-part / y-part; fused mean|var head)
    zw1x, zw1y, zb1, zw2, zb2, zwmv, zbmv,
    # p(z|y) MLP (fused mean|var head)
    pw1, pb1, pw2, pb2, pwmv, pbmv,
    # p(x|z) MLP (fused mean|var head)
    xw1, xb1, xw2, xb2, xwmv, xbmv,
    # outputs
    qy_logit_ref, qy_ref, zmv_ref, z_ref, zp_ref, xmv_ref,
):
    relu = jax.nn.relu
    x = x_ref[...]                                   # (B, n_x) f32
    NZ = z_ref.shape[-1]
    NX = xmv_ref.shape[-1] // 2
    H = zb1.shape[-1]
    KB = z_ref.shape[0]                              # k * B

    # ---------------- q(y|x): x-only, computed once -------------------------
    h = relu(_mxu_dot(x, qw1[...]) + qb1[...])
    h = relu(_mxu_dot(h, qw2[...]) + qb2[...])
    logits = _mxu_dot(h, qw3[...]) + qb3[...]        # (B, K)
    qy_logit_ref[...] = logits
    m = jnp.max(logits, axis=-1, keepdims=True)
    e = jnp.exp(logits - m)
    qy_ref[...] = e / jnp.sum(e, axis=-1, keepdims=True)

    # --------- per-component, batch-independent pieces (one-hot tricks) -----
    # y_tmp is one-hot(i)  =>  y_tmp @ W == W[i, :]  (no one-hot matmuls).
    yt_all = ytw[...].astype(jnp.float32) + ytb[...]           # (K, K): ytransform of every one-hot
    yt_contrib = _mxu_dot(yt_all, zw1y[...])                   # (K, H): per-component layer-1 add

    # p(z|y) prior: fully batch-independent -> compute once per component.
    hp = relu(pw1[...].astype(jnp.float32) + pb1[...])         # (K, H)
    hp = relu(_mxu_dot(hp, pw2[...]) + pb2[...])               # (K, H)
    p_head = _mxu_dot(hp, pwmv[...]) + pbmv[...]               # (K, 2*NZ) = [zm_prior | pre-var]
    lane_p = jax.lax.broadcasted_iota(jnp.int32, p_head.shape, 1)
    zp_ref[...] = jnp.where(lane_p < NZ, p_head, _softplus(p_head))

    # --------- q(z|x, yt): all k components batched as (k*B, .) rows --------
    pre_x = _mxu_dot(x, zw1x[...]) + zb1[...]                  # (B, H), component-invariant
    pre = pre_x[None, :, :] + yt_contrib[:, None, :]           # (K, B, H)
    h1 = jnp.reshape(relu(pre), (KB, H))                       # (K*B, H)
    h2 = relu(_mxu_dot(h1, zw2[...]) + zb2[...])               # (K*B, H)
    z_head = _mxu_dot(h2, zwmv[...]) + zbmv[...]               # (K*B, 2*NZ) = [zm | pre-var]
    lane_z = jax.lax.broadcasted_iota(jnp.int32, z_head.shape, 1)
    zmv = jnp.where(lane_z < NZ, z_head, _softplus(z_head))    # [zm | zv]
    zmv_ref[...] = zmv
    zm = zmv[:, :NZ]
    zv = zmv[:, NZ:]

    # Reparameterized gaussian sample (noise supplied from outside).
    z = zm + jnp.sqrt(zv) * eps_ref[...]                       # (K*B, NZ)
    z_ref[...] = z

    # --------- p(x|z) decoder, all components batched ------------------------
    hx = relu(_mxu_dot(z, xw1[...]) + xb1[...])                # (K*B, H)
    hx = relu(_mxu_dot(hx, xw2[...]) + xb2[...])               # (K*B, H)
    x_head = _mxu_dot(hx, xwmv[...]) + xbmv[...]               # (K*B, 2*NX) -> 128-lane dense
    lane_x = jax.lax.broadcasted_iota(jnp.int32, x_head.shape, 1)
    xmv_ref[...] = jnp.where(lane_x < NX, x_head, _softplus(x_head))


def make_params(key, n_x, n_z, k, h):
    keys = jax.random.split(key, 16)
    it = iter(keys)

    def lin(fi, fo):
        w = jax.random.normal(next(it), (fi, fo), jnp.float32) / jnp.sqrt(jnp.float32(fi))
        b = jnp.zeros((1, fo), jnp.float32)
        return w, b

    qw1, qb1 = lin(n_x, h); qw2, qb2 = lin(h, h); qw3, qb3 = lin(h, k)
    ytw, ytb = lin(k, k)
    zw1, zb1 = lin(n_x + k, h)
    zw1x, zw1y = zw1[:n_x], zw1[n_x:]
    zw2, zb2 = lin(h, h); zwm, zbm = lin(h, n_z); zwv, zbv = lin(h, n_z)
    pw1, pb1 = lin(k, h); pw2, pb2 = lin(h, h); pwm, pbm = lin(h, n_z); pwv, pbv = lin(h, n_z)
    xw1, xb1 = lin(n_z, h); xw2, xb2 = lin(h, h); xwm, xbm = lin(h, n_x); xwv, xbv = lin(h, n_x)
    return (qw1, qb1, qw2, qb2, qw3, qb3,
            ytw, ytb,
            zw1x, zw1y, zb1, zw2, zb2, zwm, zbm, zwv, zbv,
            pw1, pb1, pw2, pb2, pwm, pbm, pwv, pbv,
            xw1, xb1, xw2, xb2, xwm, xbm, xwv, xbv)


def _prep_kernel_params(params):
    """Fuse mean|variance heads and cast matmul weights to bf16 (biases stay f32)."""
    (qw1, qb1, qw2, qb2, qw3, qb3,
     ytw, ytb,
     zw1x, zw1y, zb1, zw2, zb2, zwm, zbm, zwv, zbv,
     pw1, pb1, pw2, pb2, pwm, pbm, pwv, pbv,
     xw1, xb1, xw2, xb2, xwm, xbm, xwv, xbv) = params
    c = lambda w: w.astype(MXU_DTYPE)
    cat = lambda a, b: jnp.concatenate([a, b], axis=-1)
    return (c(qw1), qb1, c(qw2), qb2, c(qw3), qb3,
            c(ytw), ytb,
            c(zw1x), c(zw1y), zb1, c(zw2), zb2, c(cat(zwm, zwv)), cat(zbm, zbv),
            c(pw1), pb1, c(pw2), pb2, c(cat(pwm, pwv)), cat(pbm, pbv),
            c(xw1), xb1, c(xw2), xb2, c(cat(xwm, xwv)), cat(xbm, xbv))


@functools.partial(jax.jit, static_argnames=("k",))
def gmvae_forward(x, eps, params, k):
    B, n_x = x.shape
    n_z = eps.shape[-1]
    kparams = _prep_kernel_params(params)
    eps2 = eps.reshape(k * B, n_z)           # row i*B+b  <->  (component i, batch b)

    out_shape = (
        jax.ShapeDtypeStruct((B, k), jnp.float32),            # qy_logit
        jax.ShapeDtypeStruct((B, k), jnp.float32),            # qy
        jax.ShapeDtypeStruct((k * B, 2 * n_z), jnp.float32),  # [zm | zv]
        jax.ShapeDtypeStruct((k * B, n_z), jnp.float32),      # z
        jax.ShapeDtypeStruct((k, 2 * n_z), jnp.float32),      # [zm_prior | zv_prior] (batch-indep)
        jax.ShapeDtypeStruct((k * B, 2 * n_x), jnp.float32),  # [xm | xv]  (128-lane dense)
    )
    # Single invocation, no grid: all operands live wholly in VMEM (working set
    # is a few hundred KiB), so there is no pipelining / constant double-buffering.
    qy_logit, qy, zmv, z2, zp, xmv = pl.pallas_call(
        gmvae_kernel,
        out_shape=out_shape,
    )(x, eps2, *kparams)

    # Repack to the reference (k, B, feature) layout with cheap XLA reshapes.
    zm = zmv[:, :n_z].reshape(k, B, n_z)
    zv = zmv[:, n_z:].reshape(k, B, n_z)
    z = z2.reshape(k, B, n_z)
    zm_prior = jnp.broadcast_to(zp[:, None, :n_z], (k, B, n_z))
    zv_prior = jnp.broadcast_to(zp[:, None, n_z:], (k, B, n_z))
    xm = xmv[:, :n_x].reshape(k, B, n_x)
    xv = xmv[:, n_x:].reshape(k, B, n_x)
    return qy_logit, qy, z, zm, zv, zm_prior, zv_prior, xm, xv


def gmvae_ref(x, eps, params, k):
    """Pure-JAX reference of the module's forward loop.

    Uses the same MXU precision policy as the kernel (bf16 matmul operands,
    f32 accumulation, f32 elementwise math) so the comparison is apples-to-apples.
    """
    (qw1, qb1, qw2, qb2, qw3, qb3,
     ytw, ytb,
     zw1x, zw1y, zb1, zw2, zb2, zwm, zbm, zwv, zbv,
     pw1, pb1, pw2, pb2, pwm, pbm, pwv, pbv,
     xw1, xb1, xw2, xb2, xwm, xbm, xwv, xbv) = params
    relu = jax.nn.relu
    sp = _softplus
    dot = _mxu_dot
    B = x.shape[0]
    h = relu(dot(x, qw1) + qb1)
    h = relu(dot(h, qw2) + qb2)
    qy_logit = h @ jnp.zeros((k, k)) if False else dot(h, qw3) + qb3
    qy = jax.nn.softmax(qy_logit, axis=-1)
    eye = jnp.eye(k, dtype=jnp.float32)
    zs, zms, zvs, zmps, zvps, xms, xvs = ([] for _ in range(7))
    for i in range(k):
        y = jnp.zeros((B, k), jnp.float32) + eye[i]
        yt = dot(y, ytw) + ytb
        hq = relu(dot(x, zw1x) + dot(yt, zw1y) + zb1)
        hq = relu(dot(hq, zw2) + zb2)
        zm = dot(hq, zwm) + zbm
        zv = sp(dot(hq, zwv) + zbv)
        z = zm + jnp.sqrt(zv) * eps[i]
        hp = relu(dot(y, pw1) + pb1)
        hp = relu(dot(hp, pw2) + pb2)
        zmp = dot(hp, pwm) + pbm
        zvp = sp(dot(hp, pwv) + pbv)
        hx = relu(dot(z, xw1) + xb1)
        hx = relu(dot(hx, xw2) + xb2)
        xm = dot(hx, xwm) + xbm
        xv = sp(dot(hx, xwv) + xbv)
        for lst, v in zip((zs, zms, zvs, zmps, zvps, xms, xvs),
                          (z, zm, zv, zmp, zvp, xm, xv)):
            lst.append(v)
    st = lambda L: jnp.stack(L, 0)
    return (qy_logit, qy, st(zs), st(zms), st(zvs), st(zmps), st(zvps), st(xms), st(xvs))


if __name__ == "__main__":
    B, N_X, N_Z, K, H = 8, 64, 16, 8, 32   # small shapes consistent with the module

    key = jax.random.PRNGKey(0)
    kx, keps, kp = jax.random.split(key, 3)
    x = jax.random.normal(kx, (B, N_X), jnp.float32)
    # TODO(synk): torch.randn inside GaussianSample has no in-kernel equivalent here;
    # reparameterization noise is generated outside and passed in per component.
    eps = jax.random.normal(keps, (K, B, N_Z), jnp.float32)
    params = make_params(kp, N_X, N_Z, K, H)

    outs = gmvae_forward(x, eps, params, k=K)
    outs = jax.block_until_ready(outs)

    ref = gmvae_ref(x, eps, params, K)
    for got, want in zip(outs, ref):
        assert got.shape == want.shape and got.dtype == want.dtype
        assert bool(jnp.all(jnp.isfinite(got)))
        assert bool(jnp.allclose(got, want, atol=1e-2, rtol=1e-2))

    print("KERNEL_OK")
</pallas_src>

<mosaic_0001>
module attributes {stable_mosaic.version = 11 : i64} {
  func.func @gmvae_kernel(%arg0: memref<8x64xf32, #tpu.memory_space<vmem>>, %arg1: memref<64x16xf32, #tpu.memory_space<vmem>>, %arg2: memref<64x32xbf16, #tpu.memory_space<vmem>>, %arg3: memref<1x32xf32, #tpu.memory_space<vmem>>, %arg4: memref<32x32xbf16, #tpu.memory_space<vmem>>, %arg5: memref<1x32xf32, #tpu.memory_space<vmem>>, %arg6: memref<32x8xbf16, #tpu.memory_space<vmem>>, %arg7: memref<1x8xf32, #tpu.memory_space<vmem>>, %arg8: memref<8x8xbf16, #tpu.memory_space<vmem>>, %arg9: memref<1x8xf32, #tpu.memory_space<vmem>>, %arg10: memref<64x32xbf16, #tpu.memory_space<vmem>>, %arg11: memref<8x32xbf16, #tpu.memory_space<vmem>>, %arg12: memref<1x32xf32, #tpu.memory_space<vmem>>, %arg13: memref<32x32xbf16, #tpu.memory_space<vmem>>, %arg14: memref<1x32xf32, #tpu.memory_space<vmem>>, %arg15: memref<32x32xbf16, #tpu.memory_space<vmem>>, %arg16: memref<1x32xf32, #tpu.memory_space<vmem>>, %arg17: memref<8x32xbf16, #tpu.memory_space<vmem>>, %arg18: memref<1x32xf32, #tpu.memory_space<vmem>>, %arg19: memref<32x32xbf16, #tpu.memory_space<vmem>>, %arg20: memref<1x32xf32, #tpu.memory_space<vmem>>, %arg21: memref<32x32xbf16, #tpu.memory_space<vmem>>, %arg22: memref<1x32xf32, #tpu.memory_space<vmem>>, %arg23: memref<16x32xbf16, #tpu.memory_space<vmem>>, %arg24: memref<1x32xf32, #tpu.memory_space<vmem>>, %arg25: memref<32x32xbf16, #tpu.memory_space<vmem>>, %arg26: memref<1x32xf32, #tpu.memory_space<vmem>>, %arg27: memref<32x128xbf16, #tpu.memory_space<vmem>>, %arg28: memref<1x128xf32, #tpu.memory_space<vmem>>, %arg29: memref<8x8xf32, #tpu.memory_space<vmem>>, %arg30: memref<8x8xf32, #tpu.memory_space<vmem>>, %arg31: memref<64x32xf32, #tpu.memory_space<vmem>>, %arg32: memref<64x16xf32, #tpu.memory_space<vmem>>, %arg33: memref<8x32xf32, #tpu.memory_space<vmem>>, %arg34: memref<64x128xf32, #tpu.memory_space<vmem>>) attributes {dimension_semantics = [], scalar_prefetch = 0 : i64, scratch_operands = 0 : i64, tpu.core_type = #tpu.core_type<tc>} {
    %c0 = arith.constant 0 : index
    %c0_0 = arith.constant 0 : index
    %0 = vector.load %arg0[%c0, %c0_0] : memref<8x64xf32, #tpu.memory_space<vmem>>, vector<8x64xf32>
    %c0_1 = arith.constant 0 : index
    %c0_2 = arith.constant 0 : index
    %1 = vector.load %arg2[%c0_1, %c0_2] : memref<64x32xbf16, #tpu.memory_space<vmem>>, vector<64x32xbf16>
    %2 = arith.truncf %0 : vector<8x64xf32> to vector<8x64xbf16>
    %cst = arith.constant dense<0.000000e+00> : vector<8x32xf32>
    %3 = tpu.matmul %2, %1, %cst {dimension_numbers = #tpu.dot_dimension_numbers<[1], [0], [0], [1], [0, 0, 1, 1], [], []>} : vector<8x64xbf16>, vector<64x32xbf16>, vector<8x32xf32> -> vector<8x32xf32>
    %c0_3 = arith.constant 0 : index
    %c0_4 = arith.constant 0 : index
    %4 = vector.load %arg3[%c0_3, %c0_4] : memref<1x32xf32, #tpu.memory_space<vmem>>, vector<1x32xf32>
    %5 = vector.broadcast %4 : vector<1x32xf32> to vector<8x32xf32>
    %6 = arith.addf %3, %5 : vector<8x32xf32>
    %cst_5 = arith.constant 0.000000e+00 : f32
    %7 = vector.broadcast %cst_5 : f32 to vector<8x32xf32>
    %8 = arith.maximumf %6, %7 : vector<8x32xf32>
    %c0_6 = arith.constant 0 : index
    %c0_7 = arith.constant 0 : index
    %9 = vector.load %arg4[%c0_6, %c0_7] : memref<32x32xbf16, #tpu.memory_space<vmem>>, vector<32x32xbf16>
    %10 = arith.truncf %8 : vector<8x32xf32> to vector<8x32xbf16>
    %cst_8 = arith.constant dense<0.000000e+00> : vector<8x32xf32>
    %11 = tpu.matmul %10, %9, %cst_8 {dimension_numbers = #tpu.dot_dimension_numbers<[1], [0], [0], [1], [0, 0, 1, 1], [], []>} : vector<8x32xbf16>, vector<32x32xbf16>, vector<8x32xf32> -> vector<8x32xf32>
    %c0_9 = arith.constant 0 : index
    %c0_10 = arith.constant 0 : index
    %12 = vector.load %arg5[%c0_9, %c0_10] : memref<1x32xf32, #tpu.memory_space<vmem>>, vector<1x32xf32>
    %13 = vector.broadcast %12 : vector<1x32xf32> to vector<8x32xf32>
    %14 = arith.addf %11, %13 : vector<8x32xf32>
    %cst_11 = arith.constant 0.000000e+00 : f32
    %15 = vector.broadcast %cst_11 : f32 to vector<8x32xf32>
    %16 = arith.maximumf %14, %15 : vector<8x32xf32>
    %c0_12 = arith.constant 0 : index
    %c0_13 = arith.constant 0 : index
    %17 = vector.load %arg6[%c0_12, %c0_13] : memref<32x8xbf16, #tpu.memory_space<vmem>>, vector<32x8xbf16>
    %18 = arith.truncf %16 : vector<8x32xf32> to vector<8x32xbf16>
    %cst_14 = arith.constant dense<0.000000e+00> : vector<8x8xf32>
    %19 = tpu.matmul %18, %17, %cst_14 {dimension_numbers = #tpu.dot_dimension_numbers<[1], [0], [0], [1], [0, 0, 1, 1], [], []>} : vector<8x32xbf16>, vector<32x8xbf16>, vector<8x8xf32> -> vector<8x8xf32>
    %c0_15 = arith.constant 0 : index
    %c0_16 = arith.constant 0 : index
    %20 = vector.load %arg7[%c0_15, %c0_16] : memref<1x8xf32, #tpu.memory_space<vmem>>, vector<1x8xf32>
    %21 = vector.broadcast %20 : vector<1x8xf32> to vector<8x8xf32>
    %22 = arith.addf %19, %21 : vector<8x8xf32>
    %c0_17 = arith.constant 0 : index
    %c0_18 = arith.constant 0 : index
    %23 = vector.load %arg29[%c0_17, %c0_18] : memref<8x8xf32, #tpu.memory_space<vmem>>, vector<8x8xf32>
    tpu.vector_store %arg29[%c0_17, %c0_18], %22 {strides = array<i32>} : memref<8x8xf32, #tpu.memory_space<vmem>>, vector<8x8xf32>,
    %cst_19 = arith.constant dense<0xFF800000> : vector<8xf32>
    %24 = vector.multi_reduction <maximumf>, %22, %cst_19 [1] : vector<8x8xf32> to vector<8xf32>
    %25 = vector.shape_cast %24 : vector<8xf32> to vector<8x1xf32>
    %26 = vector.broadcast %25 : vector<8x1xf32> to vector<8x8xf32>
    %27 = arith.subf %22, %26 : vector<8x8xf32>
    %28 = math.exp %27 : vector<8x8xf32>
    %cst_20 = arith.constant dense<0.000000e+00> : vector<8xf32>
    %29 = vector.multi_reduction <add>, %28, %cst_20 [1] : vector<8x8xf32> to vector<8xf32>
    %30 = vector.shape_cast %29 : vector<8xf32> to vector<8x1xf32>
    %31 = vector.broadcast %30 : vector<8x1xf32> to vector<8x8xf32>
    %32 = arith.divf %28, %31 : vector<8x8xf32>
    %c0_21 = arith.constant 0 : index
    %c0_22 = arith.constant 0 : index
    %33 = vector.load %arg30[%c0_21, %c0_22] : memref<8x8xf32, #tpu.memory_space<vmem>>, vector<8x8xf32>
    tpu.vector_store %arg30[%c0_21, %c0_22], %32 {strides = array<i32>} : memref<8x8xf32, #tpu.memory_space<vmem>>, vector<8x8xf32>,
    %c0_23 = arith.constant 0 : index
    %c0_24 = arith.constant 0 : index
    %34 = vector.load %arg8[%c0_23, %c0_24] : memref<8x8xbf16, #tpu.memory_space<vmem>>, vector<8x8xbf16>
    %35 = arith.extf %34 : vector<8x8xbf16> to vector<8x8xf32>
    %c0_25 = arith.constant 0 : index
    %c0_26 = arith.constant 0 : index
    %36 = vector.load %arg9[%c0_25, %c0_26] : memref<1x8xf32, #tpu.memory_space<vmem>>, vector<1x8xf32>
    %37 = vector.broadcast %36 : vector<1x8xf32> to vector<8x8xf32>
    %38 = arith.addf %35, %37 : vector<8x8xf32>
    %c0_27 = arith.constant 0 : index
    %c0_28 = arith.constant 0 : index
    %39 = vector.load %arg11[%c0_27, %c0_28] : memref<8x32xbf16, #tpu.memory_space<vmem>>, vector<8x32xbf16>
    %40 = arith.truncf %38 : vector<8x8xf32> to vector<8x8xbf16>
    %cst_29 = arith.constant dense<0.000000e+00> : vector<8x32xf32>
    %41 = tpu.matmul %40, %39, %cst_29 {dimension_numbers = #tpu.dot_dimension_numbers<[1], [0], [0], [1], [0, 0, 1, 1], [], []>} : vector<8x8xbf16>, vector<8x32xbf16>, vector<8x32xf32> -> vector<8x32xf32>
    %c0_30 = arith.constant 0 : index
    %c0_31 = arith.constant 0 : index
    %42 = vector.load %arg17[%c0_30, %c0_31] : memref<8x32xbf16, #tpu.memory_space<vmem>>, vector<8x32xbf16>
    %43 = arith.extf %42 : vector<8x32xbf16> to vector<8x32xf32>
    %c0_32 = arith.constant 0 : index
    %c0_33 = arith.constant 0 : index
    %44 = vector.load %arg18[%c0_32, %c0_33] : memref<1x32xf32, #tpu.memory_space<vmem>>, vector<1x32xf32>
    %45 = vector.broadcast %44 : vector<1x32xf32> to vector<8x32xf32>
    %46 = arith.addf %43, %45 : vector<8x32xf32>
    %cst_34 = arith.constant 0.000000e+00 : f32
    %47 = vector.broadcast %cst_34 : f32 to vector<8x32xf32>
    %48 = arith.maximumf %46, %47 : vector<8x32xf32>
    %c0_35 = arith.constant 0 : index
    %c0_36 = arith.constant 0 : index
    %49 = vector.load %arg19[%c0_35, %c0_36] : memref<32x32xbf16, #tpu.memory_space<vmem>>, vector<32x32xbf16>
    %50 = arith.truncf %48 : vector<8x32xf32> to vector<8x32xbf16>
    %cst_37 = arith.constant dense<0.000000e+00> : vector<8x32xf32>
    %51 = tpu.matmul %50, %49, %cst_37 {dimension_numbers = #tpu.dot_dimension_numbers<[1], [0], [0], [1], [0, 0, 1, 1], [], []>} : vector<8x32xbf16>, vector<32x32xbf16>, vector<8x32xf32> -> vector<8x32xf32>
    %c0_38 = arith.constant 0 : index
    %c0_39 = arith.constant 0 : index
    %52 = vector.load %arg20[%c0_38, %c0_39] : memref<1x32xf32, #tpu.memory_space<vmem>>, vector<1x32xf32>
    %53 = vector.broadcast %52 : vector<1x32xf32> to vector<8x32xf32>
    %54 = arith.addf %51, %53 : vector<8x32xf32>
    %cst_40 = arith.constant 0.000000e+00 : f32
    %55 = vector.broadcast %cst_40 : f32 to vector<8x32xf32>
    %56 = arith.maximumf %54, %55 : vector<8x32xf32>
    %c0_41 = arith.constant 0 : index
    %c0_42 = arith.constant 0 : index
    %57 = vector.load %arg21[%c0_41, %c0_42] : memref<32x32xbf16, #tpu.memory_space<vmem>>, vector<32x32xbf16>
    %58 = arith.truncf %56 : vector<8x32xf32> to vector<8x32xbf16>
    %cst_43 = arith.constant dense<0.000000e+00> : vector<8x32xf32>
    %59 = tpu.matmul %58, %57, %cst_43 {dimension_numbers = #tpu.dot_dimension_numbers<[1], [0], [0], [1], [0, 0, 1, 1], [], []>} : vector<8x32xbf16>, vector<32x32xbf16>, vector<8x32xf32> -> vector<8x32xf32>
    %c0_44 = arith.constant 0 : index
    %c0_45 = arith.constant 0 : index
    %60 = vector.load %arg22[%c0_44, %c0_45] : memref<1x32xf32, #tpu.memory_space<vmem>>, vector<1x32xf32>
    %61 = vector.broadcast %60 : vector<1x32xf32> to vector<8x32xf32>
    %62 = arith.addf %59, %61 : vector<8x32xf32>
    %63 = tpu.iota {dimensions = array<i32: 1>} : vector<8x32xi32>
    %c16_i32 = arith.constant 16 : i32
    %64 = vector.broadcast %c16_i32 : i32 to vector<8x32xi32>
    %65 = arith.cmpi slt, %63, %64 : vector<8x32xi32>
    %cst_46 = arith.constant 0.000000e+00 : f32
    %66 = vector.broadcast %cst_46 : f32 to vector<8x32xf32>
    %67 = arith.maximumf %62, %66 : vector<8x32xf32>
    %68 = vector.broadcast %cst_46 : f32 to vector<8x32xf32>
    %69 = arith.subf %62, %68 : vector<8x32xf32>
    %70 = arith.cmpf one, %69, %69 : vector<8x32xf32>
    %71 = vector.broadcast %cst_46 : f32 to vector<8x32xf32>
    %72 = arith.addf %62, %71 : vector<8x32xf32>
    %73 = math.absf %69 : vector<8x32xf32>
    %cst_47 = arith.constant 0.000000e+00 : f32
    %74 = vector.broadcast %cst_47 : f32 to vector<8x32xf32>
    %75 = arith.subf %74, %73 : vector<8x32xf32>
    %76 = math.exp %75 : vector<8x32xf32>
    %77 = math.log1p %76 : vector<8x32xf32>
    %78 = arith.addf %67, %77 : vector<8x32xf32>
    %79 = arith.select %70, %72, %78 : vector<8x32xi1>, vector<8x32xf32>
    %80 = arith.select %65, %62, %79 : vector<8x32xi1>, vector<8x32xf32>
    %c0_48 = arith.constant 0 : index
    %c0_49 = arith.constant 0 : index
    %81 = vector.load %arg33[%c0_48, %c0_49] : memref<8x32xf32, #tpu.memory_space<vmem>>, vector<8x32xf32>
    tpu.vector_store %arg33[%c0_48, %c0_49], %80 {strides = array<i32>} : memref<8x32xf32, #tpu.memory_space<vmem>>, vector<8x32xf32>,
    %c0_50 = arith.constant 0 : index
    %c0_51 = arith.constant 0 : index
    %82 = vector.load %arg10[%c0_50, %c0_51] : memref<64x32xbf16, #tpu.memory_space<vmem>>, vector<64x32xbf16>
    %83 = arith.truncf %0 : vector<8x64xf32> to vector<8x64xbf16>
    %cst_52 = arith.constant dense<0.000000e+00> : vector<8x32xf32>
    %84 = tpu.matmul %83, %82, %cst_52 {dimension_numbers = #tpu.dot_dimension_numbers<[1], [0], [0], [1], [0, 0, 1, 1], [], []>} : vector<8x64xbf16>, vector<64x32xbf16>, vector<8x32xf32> -> vector<8x32xf32>
    %c0_53 = arith.constant 0 : index
    %c0_54 = arith.constant 0 : index
    %85 = vector.load %arg12[%c0_53, %c0_54] : memref<1x32xf32, #tpu.memory_space<vmem>>, vector<1x32xf32>
    %86 = vector.broadcast %85 : vector<1x32xf32> to vector<8x32xf32>
    %87 = arith.addf %84, %86 : vector<8x32xf32>
    %88 = vector.shape_cast %87 : vector<8x32xf32> to vector<1x8x32xf32>
    %89 = vector.shape_cast %41 : vector<8x32xf32> to vector<8x1x32xf32>
    %90 = vector.broadcast %88 : vector<1x8x32xf32> to vector<8x8x32xf32>
    %91 = vector.broadcast %89 : vector<8x1x32xf32> to vector<8x8x32xf32>
    %92 = arith.addf %90, %91 : vector<8x8x32xf32>
    %cst_55 = arith.constant 0.000000e+00 : f32
    %93 = vector.broadcast %cst_55 : f32 to vector<8x8x32xf32>
    %94 = arith.maximumf %92, %93 : vector<8x8x32xf32>
    %95 = vector.shape_cast %94 : vector<8x8x32xf32> to vector<64x32xf32>
    %c0_56 = arith.constant 0 : index
    %c0_57 = arith.constant 0 : index
    %96 = vector.load %arg13[%c0_56, %c0_57] : memref<32x32xbf16, #tpu.memory_space<vmem>>, vector<32x32xbf16>
    %97 = arith.truncf %95 : vector<64x32xf32> to vector<64x32xbf16>
    %cst_58 = arith.constant dense<0.000000e+00> : vector<64x32xf32>
    %98 = tpu.matmul %97, %96, %cst_58 {dimension_numbers = #tpu.dot_dimension_numbers<[1], [0], [0], [1], [0, 0, 1, 1], [], []>} : vector<64x32xbf16>, vector<32x32xbf16>, vector<64x32xf32> -> vector<64x32xf32>
    %c0_59 = arith.constant 0 : index
    %c0_60 = arith.constant 0 : index
    %99 = vector.load %arg14[%c0_59, %c0_60] : memref<1x32xf32, #tpu.memory_space<vmem>>, vector<1x32xf32>
    %100 = vector.broadcast %99 : vector<1x32xf32> to vector<64x32xf32>
    %101 = arith.addf %98, %100 : vector<64x32xf32>
    %cst_61 = arith.constant 0.000000e+00 : f32
    %102 = vector.broadcast %cst_61 : f32 to vector<64x32xf32>
    %103 = arith.maximumf %101, %102 : vector<64x32xf32>
    %c0_62 = arith.constant 0 : index
    %c0_63 = arith.constant 0 : index
    %104 = vector.load %arg15[%c0_62, %c0_63] : memref<32x32xbf16, #tpu.memory_space<vmem>>, vector<32x32xbf16>
    %105 = arith.truncf %103 : vector<64x32xf32> to vector<64x32xbf16>
    %cst_64 = arith.constant dense<0.000000e+00> : vector<64x32xf32>
    %106 = tpu.matmul %105, %104, %cst_64 {dimension_numbers = #tpu.dot_dimension_numbers<[1], [0], [0], [1], [0, 0, 1, 1], [], []>} : vector<64x32xbf16>, vector<32x32xbf16>, vector<64x32xf32> -> vector<64x32xf32>
    %c0_65 = arith.constant 0 : index
    %c0_66 = arith.constant 0 : index
    %107 = vector.load %arg16[%c0_65, %c0_66] : memref<1x32xf32, #tpu.memory_space<vmem>>, vector<1x32xf32>
    %108 = vector.broadcast %107 : vector<1x32xf32> to vector<64x32xf32>
    %109 = arith.addf %106, %108 : vector<64x32xf32>
    %110 = tpu.iota {dimensions = array<i32: 1>} : vector<64x32xi32>
    %c16_i32_67 = arith.constant 16 : i32
    %111 = vector.broadcast %c16_i32_67 : i32 to vector<64x32xi32>
    %112 = arith.cmpi slt, %110, %111 : vector<64x32xi32>
    %cst_68 = arith.constant 0.000000e+00 : f32
    %113 = vector.broadcast %cst_68 : f32 to vector<64x32xf32>
    %114 = arith.maximumf %109, %113 : vector<64x32xf32>
    %115 = vector.broadcast %cst_68 : f32 to vector<64x32xf32>
    %116 = arith.subf %109, %115 : vector<64x32xf32>
    %117 = arith.cmpf one, %116, %116 : vector<64x32xf32>
    %118 = vector.broadcast %cst_68 : f32 to vector<64x32xf32>
    %119 = arith.addf %109, %118 : vector<64x32xf32>
    %120 = math.absf %116 : vector<64x32xf32>
    %cst_69 = arith.constant 0.000000e+00 : f32
    %121 = vector.broadcast %cst_69 : f32 to vector<64x32xf32>
    %122 = arith.subf %121, %120 : vector<64x32xf32>
    %123 = math.exp %122 : vector<64x32xf32>
    %124 = math.log1p %123 : vector<64x32xf32>
    %125 = arith.addf %114, %124 : vector<64x32xf32>
    %126 = arith.select %117, %119, %125 : vector<64x32xi1>, vector<64x32xf32>
    %127 = arith.select %112, %109, %126 : vector<64x32xi1>, vector<64x32xf32>
    %c0_70 = arith.constant 0 : index
    %c0_71 = arith.constant 0 : index
    %128 = vector.load %arg31[%c0_70, %c0_71] : memref<64x32xf32, #tpu.memory_space<vmem>>, vector<64x32xf32>
    tpu.vector_store %arg31[%c0_70, %c0_71], %127 {strides = array<i32>} : memref<64x32xf32, #tpu.memory_space<vmem>>, vector<64x32xf32>,
    %129 = vector.extract_strided_slice %127 {offsets = [0, 0], sizes = [64, 16], strides = [1, 1]} : vector<64x32xf32> to vector<64x16xf32>
    %130 = vector.extract_strided_slice %127 {offsets = [0, 16], sizes = [64, 16], strides = [1, 1]} : vector<64x32xf32> to vector<64x16xf32>
    %131 = math.sqrt %130 : vector<64x16xf32>
    %c0_72 = arith.constant 0 : index
    %c0_73 = arith.constant 0 : index
    %132 = vector.load %arg1[%c0_72, %c0_73] : memref<64x16xf32, #tpu.memory_space<vmem>>, vector<64x16xf32>
    %133 = arith.mulf %131, %132 : vector<64x16xf32>
    %134 = arith.addf %129, %133 : vector<64x16xf32>
    %c0_74 = arith.constant 0 : index
    %c0_75 = arith.constant 0 : index
    %135 = vector.load %arg32[%c0_74, %c0_75] : memref<64x16xf32, #tpu.memory_space<vmem>>, vector<64x16xf32>
    tpu.vector_store %arg32[%c0_74, %c0_75], %134 {strides = array<i32>} : memref<64x16xf32, #tpu.memory_space<vmem>>, vector<64x16xf32>,
    %c0_76 = arith.constant 0 : index
    %c0_77 = arith.constant 0 : index
    %136 = vector.load %arg23[%c0_76, %c0_77] : memref<16x32xbf16, #tpu.memory_space<vmem>>, vector<16x32xbf16>
    %137 = arith.truncf %134 : vector<64x16xf32> to vector<64x16xbf16>
    %cst_78 = arith.constant dense<0.000000e+00> : vector<64x32xf32>
    %138 = tpu.matmul %137, %136, %cst_78 {dimension_numbers = #tpu.dot_dimension_numbers<[1], [0], [0], [1], [0, 0, 1, 1], [], []>} : vector<64x16xbf16>, vector<16x32xbf16>, vector<64x32xf32> -> vector<64x32xf32>
    %c0_79 = arith.constant 0 : index
    %c0_80 = arith.constant 0 : index
    %139 = vector.load %arg24[%c0_79, %c0_80] : memref<1x32xf32, #tpu.memory_space<vmem>>, vector<1x32xf32>
    %140 = vector.broadcast %139 : vector<1x32xf32> to vector<64x32xf32>
    %141 = arith.addf %138, %140 : vector<64x32xf32>
    %cst_81 = arith.constant 0.000000e+00 : f32
    %142 = vector.broadcast %cst_81 : f32 to vector<64x32xf32>
    %143 = arith.maximumf %141, %142 : vector<64x32xf32>
    %c0_82 = arith.constant 0 : index
    %c0_83 = arith.constant 0 : index
    %144 = vector.load %arg25[%c0_82, %c0_83] : memref<32x32xbf16, #tpu.memory_space<vmem>>, vector<32x32xbf16>
    %145 = arith.truncf %143 : vector<64x32xf32> to vector<64x32xbf16>
    %cst_84 = arith.constant dense<0.000000e+00> : vector<64x32xf32>
    %146 = tpu.matmul %145, %144, %cst_84 {dimension_numbers = #tpu.dot_dimension_numbers<[1], [0], [0], [1], [0, 0, 1, 1], [], []>} : vector<64x32xbf16>, vector<32x32xbf16>, vector<64x32xf32> -> vector<64x32xf32>
    %c0_85 = arith.constant 0 : index
    %c0_86 = arith.constant 0 : index
    %147 = vector.load %arg26[%c0_85, %c0_86] : memref<1x32xf32, #tpu.memory_space<vmem>>, vector<1x32xf32>
    %148 = vector.broadcast %147 : vector<1x32xf32> to vector<64x32xf32>
    %149 = arith.addf %146, %148 : vector<64x32xf32>
    %cst_87 = arith.constant 0.000000e+00 : f32
    %150 = vector.broadcast %cst_87 : f32 to vector<64x32xf32>
    %151 = arith.maximumf %149, %150 : vector<64x32xf32>
    %c0_88 = arith.constant 0 : index
    %c0_89 = arith.constant 0 : index
    %152 = vector.load %arg27[%c0_88, %c0_89] : memref<32x128xbf16, #tpu.memory_space<vmem>>, vector<32x128xbf16>
    %153 = arith.truncf %151 : vector<64x32xf32> to vector<64x32xbf16>
    %cst_90 = arith.constant dense<0.000000e+00> : vector<64x128xf32>
    %154 = tpu.matmul %153, %152, %cst_90 {dimension_numbers = #tpu.dot_dimension_numbers<[1], [0], [0], [1], [0, 0, 1, 1], [], []>} : vector<64x32xbf16>, vector<32x128xbf16>, vector<64x128xf32> -> vector<64x128xf32>
    %c0_91 = arith.constant 0 : index
    %c0_92 = arith.constant 0 : index
    %155 = vector.load %arg28[%c0_91, %c0_92] : memref<1x128xf32, #tpu.memory_space<vmem>>, vector<1x128xf32>
    %156 = vector.broadcast %155 : vector<1x128xf32> to vector<64x128xf32>
    %157 = arith.addf %154, %156 : vector<64x128xf32>
    %158 = tpu.iota {dimensions = array<i32: 1>} : vector<64x128xi32>
    %c64_i32 = arith.constant 64 : i32
    %159 = vector.broadcast %c64_i32 : i32 to vector<64x128xi32>
    %160 = arith.cmpi slt, %158, %159 : vector<64x128xi32>
    %cst_93 = arith.constant 0.000000e+00 : f32
    %161 = vector.broadcast %cst_93 : f32 to vector<64x128xf32>
    %162 = arith.maximumf %157, %161 : vector<64x128xf32>
    %163 = vector.broadcast %cst_93 : f32 to vector<64x128xf32>
    %164 = arith.subf %157, %163 : vector<64x128xf32>
    %165 = arith.cmpf one, %164, %164 : vector<64x128xf32>
    %166 = vector.broadcast %cst_93 : f32 to vector<64x128xf32>
    %167 = arith.addf %157, %166 : vector<64x128xf32>
    %168 = math.absf %164 : vector<64x128xf32>
    %cst_94 = arith.constant 0.000000e+00 : f32
    %169 = vector.broadcast %cst_94 : f32 to vector<64x128xf32>
    %170 = arith.subf %169, %168 : vector<64x128xf32>
    %171 = math.exp %170 : vector<64x128xf32>
    %172 = math.log1p %171 : vector<64x128xf32>
    %173 = arith.addf %162, %172 : vector<64x128xf32>
    %174 = arith.select %165, %167, %173 : vector<64x128xi1>, vector<64x128xf32>
    %175 = arith.select %160, %157, %174 : vector<64x128xi1>, vector<64x128xf32>
    %c0_95 = arith.constant 0 : index
    %c0_96 = arith.constant 0 : index
    %176 = vector.load %arg34[%c0_95, %c0_96] : memref<64x128xf32, #tpu.memory_space<vmem>>, vector<64x128xf32>
    tpu.vector_store %arg34[%c0_95, %c0_96], %175 {strides = array<i32>} : memref<64x128xf32, #tpu.memory_space<vmem>>, vector<64x128xf32>,
    return
  }
}

</mosaic_0001>

<llo_original>
// kernel: gmvae_forward.1
$region0: #{gmvae_forward.1}
  #allocation0 [shape = 'u32[]', space=smem, size = 0x4, offset = 0x4, fixed_abs, tag = 'smem constant byte address 0x4 - core index']
  #allocation1 [shape = 'u32[144,128]{1,0:T(1,128)}', space=vmem, size = 0x12000, scoped, tag = 'internal scratch']
  %s0 = inlined_call_operand.smem [shape: u32[35], index: -1, kind: input, shape index: {}]
  %s1 = sld [smem:[%s0]]
  %s2 = scalar_lea.smem %s0, 1
  %s3 = sld [smem:[%s2]]
  %s4 = scalar_lea.smem %s0, 2
  %s5 = sld [smem:[%s4]]
  %s6 = scalar_lea.smem %s0, 3
  %s7 = sld [smem:[%s6]]
  %s8 = scalar_lea.smem %s0, 4
  %s9 = sld [smem:[%s8]]
  %s10 = scalar_lea.smem %s0, 5
  %s11 = sld [smem:[%s10]]
  %s12 = scalar_lea.smem %s0, 6
  %s13 = sld [smem:[%s12]]
  %s14 = scalar_lea.smem %s0, 7
  %s15 = sld [smem:[%s14]]
  %s16 = scalar_lea.smem %s0, 8
  %s17 = sld [smem:[%s16]]
  %s18 = scalar_lea.smem %s0, 9
  %s19 = sld [smem:[%s18]]
  %s20 = scalar_lea.smem %s0, 10
  %s21 = sld [smem:[%s20]]
  %s22 = scalar_lea.smem %s0, 11
  %s23 = sld [smem:[%s22]]
  %s24 = scalar_lea.smem %s0, 12
  %s25 = sld [smem:[%s24]]
  %s26 = scalar_lea.smem %s0, 13
  %s27 = sld [smem:[%s26]]
  %s28 = scalar_lea.smem %s0, 14
  %s29 = sld [smem:[%s28]]
  %s30 = scalar_lea.smem %s0, 15
  %s31 = sld [smem:[%s30]]
  %s32 = scalar_lea.smem %s0, 16
  %s33 = sld [smem:[%s32]]
  %s34 = scalar_lea.smem %s0, 17
  %s35 = sld [smem:[%s34]]
  %s36 = scalar_lea.smem %s0, 18
  %s37 = sld [smem:[%s36]]
  %s38 = scalar_lea.smem %s0, 19
  %s39 = sld [smem:[%s38]]
  %s40 = scalar_lea.smem %s0, 20
  %s41 = sld [smem:[%s40]]
  %s42 = scalar_lea.smem %s0, 21
  %s43 = sld [smem:[%s42]]
  %s44 = scalar_lea.smem %s0, 22
  %s45 = sld [smem:[%s44]]
  %s46 = scalar_lea.smem %s0, 23
  %s47 = sld [smem:[%s46]]
  %s48 = scalar_lea.smem %s0, 24
  %s49 = sld [smem:[%s48]]
  %s50 = scalar_lea.smem %s0, 25
  %s51 = sld [smem:[%s50]]
  %s52 = scalar_lea.smem %s0, 26
  %s53 = sld [smem:[%s52]]
  %s54 = scalar_lea.smem %s0, 27
  %s55 = sld [smem:[%s54]]
  %s56 = scalar_lea.smem %s0, 28
  %s57 = sld [smem:[%s56]]
  %s58 = scalar_lea.smem %s0, 29
  %s59 = sld [smem:[%s58]]
  %s60 = scalar_lea.smem %s0, 30
  %s61 = sld [smem:[%s60]]
  %s62 = scalar_lea.smem %s0, 31
  %s63 = sld [smem:[%s62]]
  %s64 = scalar_lea.smem %s0, 32
  %s65 = sld [smem:[%s64]]
  %s66 = scalar_lea.smem %s0, 33
  %s67 = sld [smem:[%s66]]
  %s68 = scalar_lea.smem %s0, 34
  %s69 = sld [smem:[%s68]]
  %70 = xla_tuple %s59, %s61, %s63, %s65, %s67, %s69
  %s71 = sld [smem:[#allocation0]]
  $region166: #{gmvae_forward.1} parent=0
    _
  %s73 = ssub.s32 1, %s71
  %s74 = scalar_select 0, %s73, %s71
  $region1: #{gmvae_forward.1} parent=0
    #allocation2 [shape = 'u8[4096]{0}', space=vmem, size = 0x1000, scoped, tag = 'output window, operand 0, single buffered']
    #allocation3 [shape = 's32[1]{0}', space=sflag, size = 0x4, scoped, tag = 'scoped memory for gmvae_forward.1']
    #allocation4 [shape = 'u8[4096]{0}', space=vmem, size = 0x1000, scoped, tag = 'output window, operand 1, single buffered']
    #allocation5 [shape = 's32[1]{0}', space=sflag, size = 0x4, scoped, tag = 'scoped memory for gmvae_forward.1']
    #allocation6 [shape = 'u8[32768]{0}', space=vmem, size = 0x8000, scoped, tag = 'output window, operand 3, single buffered']
    %75 = vsyncpa [#allocation3], 0
    %76 = vsyncpa [#allocation5], 0
    // Predicated region
    $region2: #{gmvae_forward.1} parent=1 // pred_check
      _
    $region3: #{gmvae_forward.1} parent=1 // pred_check_branch
      %78 = sbr.rel (0) target = $region5
    $region4: #{gmvae_forward.1} parent=1 // pred_region
      _
    $region5: #{gmvae_forward.1} parent=1 // pred_fallthru
      _
    // Predicated region
    $region6: #{gmvae_forward.1} parent=1 // pred_check
      _
    $region7: #{gmvae_forward.1} parent=1 // pred_check_branch
      %80 = sbr.rel (0) target = $region9
    $region8: #{gmvae_forward.1} parent=1 // pred_region
      _
    $region9: #{gmvae_forward.1} parent=1 // pred_fallthru
      _
    // Predicated region
    $region10: #{gmvae_forward.1} parent=1 // pred_check
      _
    $region11: #{gmvae_forward.1} parent=1 // pred_check_branch
      %82 = sbr.rel (0) target = $region13
    $region12: #{gmvae_forward.1} parent=1 // pred_region
      _
    $region13: #{gmvae_forward.1} parent=1 // pred_fallthru
      _
    // Predicated region
    $region14: #{gmvae_forward.1} parent=1 // pred_check
      _
    $region15: #{gmvae_forward.1} parent=1 // pred_check_branch
      %84 = sbr.rel (0) target = $region17
    $region16: #{gmvae_forward.1} parent=1 // pred_region
      _
    $region17: #{gmvae_forward.1} parent=1 // pred_fallthru
      _
    // Predicated region
    $region18: #{gmvae_forward.1} parent=1 // pred_check
      _
    $region19: #{gmvae_forward.1} parent=1 // pred_check_branch
      %86 = sbr.rel (0) target = $region21
    $region20: #{gmvae_forward.1} parent=1 // pred_region
      _
    $region21: #{gmvae_forward.1} parent=1 // pred_fallthru
      _
    // Predicated region
    $region22: #{gmvae_forward.1} parent=1 // pred_check
      _
    $region23: #{gmvae_forward.1} parent=1 // pred_check_branch
      %88 = sbr.rel (0) target = $region25
    $region24: #{gmvae_forward.1} parent=1 // pred_region
      _
    $region25: #{gmvae_forward.1} parent=1 // pred_fallthru
      _
    // Predicated region
    $region26: #{gmvae_forward.1} parent=1 // pred_check
      _
    $region27: #{gmvae_forward.1} parent=1 // pred_check_branch
      %90 = sbr.rel (0) target = $region29
    $region28: #{gmvae_forward.1} parent=1 // pred_region
      _
    $region29: #{gmvae_forward.1} parent=1 // pred_fallthru
      _
    // Predicated region
    $region30: #{gmvae_forward.1} parent=1 // pred_check
      _
    $region31: #{gmvae_forward.1} parent=1 // pred_check_branch
      %92 = sbr.rel (0) target = $region33
    $region32: #{gmvae_forward.1} parent=1 // pred_region
      _
    $region33: #{gmvae_forward.1} parent=1 // pred_fallthru
      _
    // Predicated region
    $region34: #{gmvae_forward.1} parent=1 // pred_check
      _
    $region35: #{gmvae_forward.1} parent=1 // pred_check_branch
      %94 = sbr.rel (0) target = $region37
    $region36: #{gmvae_forward.1} parent=1 // pred_region
      _
    $region37: #{gmvae_forward.1} parent=1 // pred_fallthru
      _
    // Predicated region
    $region38: #{gmvae_forward.1} parent=1 // pred_check
      _
    $region39: #{gmvae_forward.1} parent=1 // pred_check_branch
      %96 = sbr.rel (0) target = $region41
    $region40: #{gmvae_forward.1} parent=1 // pred_region
      _
    $region41: #{gmvae_forward.1} parent=1 // pred_fallthru
      _
    // Predicated region
    $region42: #{gmvae_forward.1} parent=1 // pred_check
      _
    $region43: #{gmvae_forward.1} parent=1 // pred_check_branch
      %98 = sbr.rel (0) target = $region45
    $region44: #{gmvae_forward.1} parent=1 // pred_region
      _
    $region45: #{gmvae_forward.1} parent=1 // pred_fallthru
      _
    // Predicated region
    $region46: #{gmvae_forward.1} parent=1 // pred_check
      _
    $region47: #{gmvae_forward.1} parent=1 // pred_check_branch
      %100 = sbr.rel (0) target = $region49
    $region48: #{gmvae_forward.1} parent=1 // pred_region
      _
    $region49: #{gmvae_forward.1} parent=1 // pred_fallthru
      _
    // Predicated region
    $region50: #{gmvae_forward.1} parent=1 // pred_check
      _
    $region51: #{gmvae_forward.1} parent=1 // pred_check_branch
      %102 = sbr.rel (0) target = $region53
    $region52: #{gmvae_forward.1} parent=1 // pred_region
      _
    $region53: #{gmvae_forward.1} parent=1 // pred_fallthru
      _
    // Predicated region
    $region54: #{gmvae_forward.1} parent=1 // pred_check
      _
    $region55: #{gmvae_forward.1} parent=1 // pred_check_branch
      %104 = sbr.rel (0) target = $region57
    $region56: #{gmvae_forward.1} parent=1 // pred_region
      _
    $region57: #{gmvae_forward.1} parent=1 // pred_fallthru
      _
    // Predicated region
    $region58: #{gmvae_forward.1} parent=1 // pred_check
      _
    $region59: #{gmvae_forward.1} parent=1 // pred_check_branch
      %106 = sbr.rel (0) target = $region61
    $region60: #{gmvae_forward.1} parent=1 // pred_region
      _
    $region61: #{gmvae_forward.1} parent=1 // pred_fallthru
      _
    // Predicated region
    $region62: #{gmvae_forward.1} parent=1 // pred_check
      _
    $region63: #{gmvae_forward.1} parent=1 // pred_check_branch
      %108 = sbr.rel (0) target = $region65
    $region64: #{gmvae_forward.1} parent=1 // pred_region
      _
    $region65: #{gmvae_forward.1} parent=1 // pred_fallthru
      _
    // Predicated region
    $region66: #{gmvae_forward.1} parent=1 // pred_check
      _
    $region67: #{gmvae_forward.1} parent=1 // pred_check_branch
      %110 = sbr.rel (0) target = $region69
    $region68: #{gmvae_forward.1} parent=1 // pred_region
      _
    $region69: #{gmvae_forward.1} parent=1 // pred_fallthru
      _
    // Predicated region
    $region70: #{gmvae_forward.1} parent=1 // pred_check
      _
    $region71: #{gmvae_forward.1} parent=1 // pred_check_branch
      %112 = sbr.rel (0) target = $region73
    $region72: #{gmvae_forward.1} parent=1 // pred_region
      _
    $region73: #{gmvae_forward.1} parent=1 // pred_fallthru
      _
    // Predicated region
    $region74: #{gmvae_forward.1} parent=1 // pred_check
      _
    $region75: #{gmvae_forward.1} parent=1 // pred_check_branch
      %114 = sbr.rel (0) target = $region77
    $region76: #{gmvae_forward.1} parent=1 // pred_region
      _
    $region77: #{gmvae_forward.1} parent=1 // pred_fallthru
      _
    // Predicated region
    $region78: #{gmvae_forward.1} parent=1 // pred_check
      _
    $region79: #{gmvae_forward.1} parent=1 // pred_check_branch
      %116 = sbr.rel (0) target = $region81
    $region80: #{gmvae_forward.1} parent=1 // pred_region
      _
    $region81: #{gmvae_forward.1} parent=1 // pred_fallthru
      _
    // Predicated region
    $region82: #{gmvae_forward.1} parent=1 // pred_check
      _
    $region83: #{gmvae_forward.1} parent=1 // pred_check_branch
      %118 = sbr.rel (0) target = $region85
    $region84: #{gmvae_forward.1} parent=1 // pred_region
      _
    $region85: #{gmvae_forward.1} parent=1 // pred_fallthru
      _
    // Predicated region
    $region86: #{gmvae_forward.1} parent=1 // pred_check
      _
    $region87: #{gmvae_forward.1} parent=1 // pred_check_branch
      %120 = sbr.rel (0) target = $region89
    $region88: #{gmvae_forward.1} parent=1 // pred_region
      _
    $region89: #{gmvae_forward.1} parent=1 // pred_fallthru
      _
    // Predicated region
    $region90: #{gmvae_forward.1} parent=1 // pred_check
      _
    $region91: #{gmvae_forward.1} parent=1 // pred_check_branch
      %122 = sbr.rel (0) target = $region93
    $region92: #{gmvae_forward.1} parent=1 // pred_region
      _
    $region93: #{gmvae_forward.1} parent=1 // pred_fallthru
      _
    // Predicated region
    $region94: #{gmvae_forward.1} parent=1 // pred_check
      _
    $region95: #{gmvae_forward.1} parent=1 // pred_check_branch
      %124 = sbr.rel (0) target = $region97
    $region96: #{gmvae_forward.1} parent=1 // pred_region
      _
    $region97: #{gmvae_forward.1} parent=1 // pred_fallthru
      _
    // Predicated region
    $region98: #{gmvae_forward.1} parent=1 // pred_check
      _
    $region99: #{gmvae_forward.1} parent=1 // pred_check_branch
      %126 = sbr.rel (0) target = $region101
    $region100: #{gmvae_forward.1} parent=1 // pred_region
      _
    $region101: #{gmvae_forward.1} parent=1 // pred_fallthru
      _
    // Predicated region
    $region102: #{gmvae_forward.1} parent=1 // pred_check
      _
    $region103: #{gmvae_forward.1} parent=1 // pred_check_branch
      %128 = sbr.rel (0) target = $region105
    $region104: #{gmvae_forward.1} parent=1 // pred_region
      _
    $region105: #{gmvae_forward.1} parent=1 // pred_fallthru
      _
    // Predicated region
    $region106: #{gmvae_forward.1} parent=1 // pred_check
      _
    $region107: #{gmvae_forward.1} parent=1 // pred_check_branch
      %130 = sbr.rel (0) target = $region109
    $region108: #{gmvae_forward.1} parent=1 // pred_region
      _
    $region109: #{gmvae_forward.1} parent=1 // pred_fallthru
      _
    // Predicated region
    $region110: #{gmvae_forward.1} parent=1 // pred_check
      _
    $region111: #{gmvae_forward.1} parent=1 // pred_check_branch
      %132 = sbr.rel (0) target = $region113
    $region112: #{gmvae_forward.1} parent=1 // pred_region
      _
    $region113: #{gmvae_forward.1} parent=1 // pred_fallthru
      _
    // Predicated region
    $region114: #{gmvae_forward.1} parent=1 // pred_check
      _
    $region115: #{gmvae_forward.1} parent=1 // pred_check_branch
      %134 = sbr.rel (0) target = $region117
    $region116: #{gmvae_forward.1} parent=1 // pred_region
      _
    $region117: #{gmvae_forward.1} parent=1 // pred_fallthru
      _
    %v136 = vld [vmem:[%s1] sm:$0xff]
    %v137 = vld [vmem:[%s5] sm:$0xf]
    %v138 = vld [vmem:[%s5 + $0x4] sm:$0xf]
    %v139 = vld [vmem:[%s5 + $0x8] sm:$0xf]
    %v140 = vld [vmem:[%s5 + $0xc] sm:$0xf]
    %v141 = vld [vmem:[%s5 + $0x10] sm:$0xf]
    %v142 = vld [vmem:[%s5 + $0x14] sm:$0xf]
    %v143 = vld [vmem:[%s5 + $0x18] sm:$0xf]
    %v144 = vld [vmem:[%s5 + $0x1c] sm:$0xf]
    %v145 = vpack.c.bf16 %v136, %v136
    %v146 = vld [vmem:[%s7] sm:$0x1]
    %v148 = vlaneseq
    %v149 = vshrl.u32 %v148, 7
    %v150 = vsub.s32 0, %v149
    %v151 = vrot.slane %v146, %v150
    %v161 = vunpack.c.l.b16 %v137
    %v162 = vunpack.c.l.b16 %v138
    %v163 = vunpack.c.l.b16 %v139
    %v164 = vunpack.c.l.b16 %v140
    %v165 = vunpack.c.l.b16 %v141
    %v166 = vunpack.c.l.b16 %v142
    %v167 = vunpack.c.l.b16 %v143
    %v168 = vunpack.c.l.b16 %v144
    %v169 = vpack.c.b16 %v162, %v161
    %v170 = vpack.c.b16 %v164, %v163
    %v171 = vpack.c.b16 %v166, %v165
    %v172 = vpack.c.b16 %v168, %v167
    %vm177 = vcmask 523264
    %v179 = vsel %vm177, %v145, 0
    %181 = vmatprep.subr.bf16.mxu0 0
    %182 = vmatpush1.bf16.msra.mxu0 %v169
    %183 = vmatprep.subr.bf16.mxu0 0
    %184 = vmatpush1.bf16.msra.mxu0 %v170
    %185 = vmatprep.subr.bf16.mxu0 0
    %186 = vmatpush1.bf16.msra.mxu0 %v171
    %187 = vmatprep.subr.bf16.mxu0 0
    %188 = vmatpush1.bf16.msra.mxu0 %v172
    %189 = vmatprep.subr.bf16.mxu0 0
    %190 = vmatpush1.bf16.msra.mxu0 0
    %191 = vmatprep.subr.bf16.mxu0 0
    %192 = vmatpush1.bf16.msra.mxu0 0
    %193 = vmatprep.subr.bf16.mxu0 0
    %194 = vmatpush1.bf16.msra.mxu0 0
    %195 = vmatprep.subr.bf16.mxu0 0
    %196 = vmatpush1.bf16.msra.mxu0 0
    %197 = vmatprep.subr.bf16.mxu0 0
    %198 = vmatpush1.bf16.msra.mxu0 0
    %199 = vmatprep.subr.bf16.mxu0 0
    %200 = vmatpush1.bf16.msra.mxu0 0
    %201 = vmatprep.subr.bf16.mxu0 0
    %202 = vmatpush1.bf16.msra.mxu0 0
    %203 = vmatprep.subr.bf16.mxu0 0
    %204 = vmatpush1.bf16.msra.mxu0 0
    %205 = vmatprep.subr.bf16.mxu0 0
    %206 = vmatpush1.bf16.msra.mxu0 0
    %207 = vmatprep.subr.bf16.mxu0 0
    %208 = vmatpush1.bf16.msra.mxu0 0
    %209 = vmatprep.subr.bf16.mxu0 0
    %210 = vmatpush1.bf16.msra.mxu0 0
    %211 = vmatprep.subr.bf16.mxu0 0
    %212 = vmatpush1.bf16.msra.mxu0 0
    %213 = vmatprep.mubr.bf16.mxu0 0
    %214 = vmatmul.mubr.bf16.gmra.mrb[0].mxu0 %v179
    %v215 = vpop.f32.mrb[0].mxu0
    %v216 = vadd.f32 %v151, %v215
    %v217 = vpop.f32.mrb[0].mxu0
    %v218 = vpop.f32.mrb[0].mxu0
    %v219 = vpop.f32.mrb[0].mxu0
    %220 = vdwg.mxu0
    %v221 = vmax.f32 %v216, 0.0
    %v222 = vld [vmem:[%s9] sm:$0xf]
    %v223 = vld [vmem:[%s9 + $0x4] sm:$0xf]
    %v224 = vld [vmem:[%s9 + $0x8] sm:$0xf]
    %v225 = vld [vmem:[%s9 + $0xc] sm:$0xf]
    %v226 = vpack.c.bf16 %v221, %v221
    %v227 = vld [vmem:[%s11] sm:$0x1]
    %v229 = vlaneseq
    %v230 = vshrl.u32 %v229, 7
    %v231 = vsub.s32 0, %v230
    %v232 = vrot.slane %v227, %v231
    %v238 = vunpack.c.l.b16 %v222
    %v239 = vunpack.c.l.b16 %v223
    %v240 = vunpack.c.l.b16 %v224
    %v241 = vunpack.c.l.b16 %v225
    %v242 = vpack.c.b16 %v239, %v238
    %v243 = vpack.c.b16 %v241, %v240
    %vm246 = vcmask 261120
    %v248 = vsel %vm246, %v226, 0
    %250 = vmatprep.subr.bf16.mxu0 0
    %251 = vmatpush1.bf16.msra.mxu0 %v242
    %252 = vmatprep.subr.bf16.mxu0 0
    %253 = vmatpush1.bf16.msra.mxu0 %v243
    %254 = vmatprep.subr.bf16.mxu0 0
    %255 = vmatpush1.bf16.msra.mxu0 0
    %256 = vmatprep.subr.bf16.mxu0 0
    %257 = vmatpush1.bf16.msra.mxu0 0
    %258 = vmatprep.subr.bf16.mxu0 0
    %259 = vmatpush1.bf16.msra.mxu0 0
    %260 = vmatprep.subr.bf16.mxu0 0
    %261 = vmatpush1.bf16.msra.mxu0 0
    %262 = vmatprep.subr.bf16.mxu0 0
    %263 = vmatpush1.bf16.msra.mxu0 0
    %264 = vmatprep.subr.bf16.mxu0 0
    %265 = vmatpush1.bf16.msra.mxu0 0
    %266 = vmatprep.subr.bf16.mxu0 0
    %267 = vmatpush1.bf16.msra.mxu0 0
    %268 = vmatprep.subr.bf16.mxu0 0
    %269 = vmatpush1.bf16.msra.mxu0 0
    %270 = vmatprep.subr.bf16.mxu0 0
    %271 = vmatpush1.bf16.msra.mxu0 0
    %272 = vmatprep.subr.bf16.mxu0 0
    %273 = vmatpush1.bf16.msra.mxu0 0
    %274 = vmatprep.subr.bf16.mxu0 0
    %275 = vmatpush1.bf16.msra.mxu0 0
    %276 = vmatprep.subr.bf16.mxu0 0
    %277 = vmatpush1.bf16.msra.mxu0 0
    %278 = vmatprep.subr.bf16.mxu0 0
    %279 = vmatpush1.bf16.msra.mxu0 0
    %280 = vmatprep.subr.bf16.mxu0 0
    %281 = vmatpush1.bf16.msra.mxu0 0
    %282 = vmatprep.mubr.bf16.mxu0 0
    %283 = vmatmul.mubr.bf16.gmra.mrb[0].mxu0 %v248
    %v284 = vpop.f32.mrb[0].mxu0
    %v285 = vadd.f32 %v232, %v284
    %v286 = vpop.f32.mrb[0].mxu0
    %v287 = vpop.f32.mrb[0].mxu0
    %v288 = vpop.f32.mrb[0].mxu0
    %289 = vdwg.mxu0
    %v290 = vmax.f32 %v285, 0.0
    %v291 = vld [vmem:[%s13] sm:$0xf]
    %v292 = vld [vmem:[%s13 + $0x4] sm:$0xf]
    %v293 = vld [vmem:[%s13 + $0x8] sm:$0xf]
    %v294 = vld [vmem:[%s13 + $0xc] sm:$0xf]
    %v295 = vpack.c.bf16 %v290, %v290
    %v296 = vld [vmem:[%s15] sm:$0x1]
    %v298 = vlaneseq
    %v299 = vshrl.u32 %v298, 7
    %v300 = vsub.s32 0, %v299
    %v301 = vrot.slane %v296, %v300
    %v307 = vunpack.c.l.b16 %v291
    %v308 = vunpack.c.l.b16 %v292
    %v309 = vunpack.c.l.b16 %v293
    %v310 = vunpack.c.l.b16 %v294
    %v311 = vpack.c.b16 %v308, %v307
    %v312 = vpack.c.b16 %v310, %v309
    %v316 = vsel %vm246, %v295, 0
    %318 = vmatprep.subr.bf16.mxu0 0
    %319 = vmatpush1.bf16.msra.mxu0 %v311
    %320 = vmatprep.subr.bf16.mxu0 0
    %321 = vmatpush1.bf16.msra.mxu0 %v312
    %322 = vmatprep.subr.bf16.mxu0 0
    %323 = vmatpush1.bf16.msra.mxu0 0
    %324 = vmatprep.subr.bf16.mxu0 0
    %325 = vmatpush1.bf16.msra.mxu0 0
    %326 = vmatprep.subr.bf16.mxu0 0
    %327 = vmatpush1.bf16.msra.mxu0 0
    %328 = vmatprep.subr.bf16.mxu0 0
    %329 = vmatpush1.bf16.msra.mxu0 0
    %330 = vmatprep.subr.bf16.mxu0 0
    %331 = vmatpush1.bf16.msra.mxu0 0
    %332 = vmatprep.subr.bf16.mxu0 0
    %333 = vmatpush1.bf16.msra.mxu0 0
    %334 = vmatprep.subr.bf16.mxu0 0
    %335 = vmatpush1.bf16.msra.mxu0 0
    %336 = vmatprep.subr.bf16.mxu0 0
    %337 = vmatpush1.bf16.msra.mxu0 0
    %338 = vmatprep.subr.bf16.mxu0 0
    %339 = vmatpush1.bf16.msra.mxu0 0
    %340 = vmatprep.subr.bf16.mxu0 0
    %341 = vmatpush1.bf16.msra.mxu0 0
    %342 = vmatprep.subr.bf16.mxu0 0
    %343 = vmatpush1.bf16.msra.mxu0 0
    %344 = vmatprep.subr.bf16.mxu0 0
    %345 = vmatpush1.bf16.msra.mxu0 0
    %346 = vmatprep.subr.bf16.mxu0 0
    %347 = vmatpush1.bf16.msra.mxu0 0
    %348 = vmatprep.subr.bf16.mxu0 0
    %349 = vmatpush1.bf16.msra.mxu0 0
    %350 = vmatprep.mubr.bf16.mxu0 0
    %351 = vmatmul.mubr.bf16.gmra.mrb[0].mxu0 %v316
    %v352 = vpop.f32.mrb[0].mxu0
    %v353 = vadd.f32 %v301, %v352
    %v354 = vpop.f32.mrb[0].mxu0
    %v355 = vpop.f32.mrb[0].mxu0
    %v356 = vpop.f32.mrb[0].mxu0
    %357 = vdwg.mxu0
    %vm358 = vcmask 64512
    %359 = vst.msk [vmem:[#allocation2] sm:$0xff] %vm358, %v353
    %v360 = vsel %vm358, %v353, -inf
    %361 = vmax.xlane.f32.xlu0 %v360
    %v362 = vpop.xlane.xlu0 %361
    %v363 = vsub.f32 %v353, %v362
    %v364 = vmul.f32 %v363, 1.442695
    %v365 = vpow.pop %v364
    %v366 = vsel %vm358, %v365, 0.0
    %367 = vadd.xlane.f32.xlu0 %v366
    %v368 = vpop.xlane.xlu0 %367
    %v369 = vrcp.pop %v368
    %v370 = vmul.f32 %v365, %v369
    %371 = vst.msk [vmem:[#allocation4] sm:$0xff] %vm358, %v370
    %v372 = vld [vmem:[%s17] sm:$0xf]
    %v373 = vunpack.c.l.bf16 %v372
    %v374 = vld [vmem:[%s19] sm:$0x1]
    %v376 = vlaneseq
    %v377 = vshrl.u32 %v376, 7
    %v378 = vsub.s32 0, %v377
    %v379 = vrot.slane %v374, %v378
    %v381 = vadd.f32 %v373, %v379
    %v382 = vld [vmem:[%s23] sm:$0xf]
    %v383 = vpack.c.bf16 %v381, %v381
    %v385 = vsel %vm358, %v383, 0
    %vm387 = vcmask 1043456
    %v389 = vsel %vm387, %v382, 0
    %391 = vmatprep.subr.bf16.mxu0 0
    %392 = vmatpush1.bf16.msra.mxu0 %v389
    %393 = vmatprep.subr.bf16.mxu0 0
    %394 = vmatpush1.bf16.msra.mxu0 0
    %395 = vmatprep.subr.bf16.mxu0 0
    %396 = vmatpush1.bf16.msra.mxu0 0
    %397 = vmatprep.subr.bf16.mxu0 0
    %398 = vmatpush1.bf16.msra.mxu0 0
    %399 = vmatprep.subr.bf16.mxu0 0
    %400 = vmatpush1.bf16.msra.mxu0 0
    %401 = vmatprep.subr.bf16.mxu0 0
    %402 = vmatpush1.bf16.msra.mxu0 0
    %403 = vmatprep.subr.bf16.mxu0 0
    %404 = vmatpush1.bf16.msra.mxu0 0
    %405 = vmatprep.subr.bf16.mxu0 0
    %406 = vmatpush1.bf16.msra.mxu0 0
    %407 = vmatprep.subr.bf16.mxu0 0
    %408 = vmatpush1.bf16.msra.mxu0 0
    %409 = vmatprep.subr.bf16.mxu0 0
    %410 = vmatpush1.bf16.msra.mxu0 0
    %411 = vmatprep.subr.bf16.mxu0 0
    %412 = vmatpush1.bf16.msra.mxu0 0
    %413 = vmatprep.subr.bf16.mxu0 0
    %414 = vmatpush1.bf16.msra.mxu0 0
    %415 = vmatprep.subr.bf16.mxu0 0
    %416 = vmatpush1.bf16.msra.mxu0 0
    %417 = vmatprep.subr.bf16.mxu0 0
    %418 = vmatpush1.bf16.msra.mxu0 0
    %419 = vmatprep.subr.bf16.mxu0 0
    %420 = vmatpush1.bf16.msra.mxu0 0
    %421 = vmatprep.subr.bf16.mxu0 0
    %422 = vmatpush1.bf16.msra.mxu0 0
    %423 = vmatprep.mubr.bf16.mxu0 0
    %424 = vmatmul.mubr.bf16.gmra.mrb[0].mxu0 %v385
    %v425 = vpop.f32.mrb[0].mxu0
    %v426 = vadd.f32 0.0, %v425
    %v427 = vpop.f32.mrb[0].mxu0
    %v428 = vpop.f32.mrb[0].mxu0
    %v429 = vpop.f32.mrb[0].mxu0
    %430 = vdwg.mxu0
    %v431 = vld [vmem:[%s35] sm:$0xf]
    %v432 = vunpack.c.l.bf16 %v431
    %v433 = vld [vmem:[%s37] sm:$0x1]
    %v435 = vlaneseq
    %v436 = vshrl.u32 %v435, 7
    %v437 = vsub.s32 0, %v436
    %v438 = vrot.slane %v433, %v437
    %v440 = vadd.f32 %v432, %v438
    %v441 = vmax.f32 %v440, 0.0
    %v442 = vld [vmem:[%s39] sm:$0xf]
    %v443 = vld [vmem:[%s39 + $0x4] sm:$0xf]
    %v444 = vld [vmem:[%s39 + $0x8] sm:$0xf]
    %v445 = vld [vmem:[%s39 + $0xc] sm:$0xf]
    %v446 = vpack.c.bf16 %v441, %v441
    %v447 = vld [vmem:[%s41] sm:$0x1]
    %v449 = vlaneseq
    %v450 = vshrl.u32 %v449, 7
    %v451 = vsub.s32 0, %v450
    %v452 = vrot.slane %v447, %v451
    %v458 = vunpack.c.l.b16 %v442
    %v459 = vunpack.c.l.b16 %v443
    %v460 = vunpack.c.l.b16 %v444
    %v461 = vunpack.c.l.b16 %v445
    %v462 = vpack.c.b16 %v459, %v458
    %v463 = vpack.c.b16 %v461, %v460
    %v467 = vsel %vm246, %v446, 0
    %469 = vmatprep.subr.bf16.mxu0 0
    %470 = vmatpush1.bf16.msra.mxu0 %v462
    %471 = vmatprep.subr.bf16.mxu0 0
    %472 = vmatpush1.bf16.msra.mxu0 %v463
    %473 = vmatprep.subr.bf16.mxu0 0
    %474 = vmatpush1.bf16.msra.mxu0 0
    %475 = vmatprep.subr.bf16.mxu0 0
    %476 = vmatpush1.bf16.msra.mxu0 0
    %477 = vmatprep.subr.bf16.mxu0 0
    %478 = vmatpush1.bf16.msra.mxu0 0
    %479 = vmatprep.subr.bf16.mxu0 0
    %480 = vmatpush1.bf16.msra.mxu0 0
    %481 = vmatprep.subr.bf16.mxu0 0
    %482 = vmatpush1.bf16.msra.mxu0 0
    %483 = vmatprep.subr.bf16.mxu0 0
    %484 = vmatpush1.bf16.msra.mxu0 0
    %485 = vmatprep.subr.bf16.mxu0 0
    %486 = vmatpush1.bf16.msra.mxu0 0
    %487 = vmatprep.subr.bf16.mxu0 0
    %488 = vmatpush1.bf16.msra.mxu0 0
    %489 = vmatprep.subr.bf16.mxu0 0
    %490 = vmatpush1.bf16.msra.mxu0 0
    %491 = vmatprep.subr.bf16.mxu0 0
    %492 = vmatpush1.bf16.msra.mxu0 0
    %493 = vmatprep.subr.bf16.mxu0 0
    %494 = vmatpush1.bf16.msra.mxu0 0
    %495 = vmatprep.subr.bf16.mxu0 0
    %496 = vmatpush1.bf16.msra.mxu0 0
    %497 = vmatprep.subr.bf16.mxu0 0
    %498 = vmatpush1.bf16.msra.mxu0 0
    %499 = vmatprep.subr.bf16.mxu0 0
    %500 = vmatpush1.bf16.msra.mxu0 0
    %501 = vmatprep.mubr.bf16.mxu0 0
    %502 = vmatmul.mubr.bf16.gmra.mrb[0].mxu0 %v467
    %v503 = vpop.f32.mrb[0].mxu0
    %v504 = vadd.f32 %v452, %v503
    %v505 = vpop.f32.mrb[0].mxu0
    %v506 = vpop.f32.mrb[0].mxu0
    %v507 = vpop.f32.mrb[0].mxu0
    %508 = vdwg.mxu0
    %v509 = vmax.f32 %v504, 0.0
    %v510 = vld [vmem:[%s43] sm:$0xf]
    %v511 = vld [vmem:[%s43 + $0x4] sm:$0xf]
    %v512 = vld [vmem:[%s43 + $0x8] sm:$0xf]
    %v513 = vld [vmem:[%s43 + $0xc] sm:$0xf]
    %v514 = vpack.c.bf16 %v509, %v509
    %v515 = vld [vmem:[%s45] sm:$0x1]
    %v517 = vlaneseq
    %v518 = vshrl.u32 %v517, 7
    %v519 = vsub.s32 0, %v518
    %v520 = vrot.slane %v515, %v519
    %v526 = vunpack.c.l.b16 %v510
    %v527 = vunpack.c.l.b16 %v511
    %v528 = vunpack.c.l.b16 %v512
    %v529 = vunpack.c.l.b16 %v513
    %v530 = vpack.c.b16 %v527, %v526
    %v531 = vpack.c.b16 %v529, %v528
    %v535 = vsel %vm246, %v514, 0
    %537 = vmatprep.subr.bf16.mxu0 0
    %538 = vmatpush1.bf16.msra.mxu0 %v530
    %539 = vmatprep.subr.bf16.mxu0 0
    %540 = vmatpush1.bf16.msra.mxu0 %v531
    %541 = vmatprep.subr.bf16.mxu0 0
    %542 = vmatpush1.bf16.msra.mxu0 0
    %543 = vmatprep.subr.bf16.mxu0 0
    %544 = vmatpush1.bf16.msra.mxu0 0
    %545 = vmatprep.subr.bf16.mxu0 0
    %546 = vmatpush1.bf16.msra.mxu0 0
    %547 = vmatprep.subr.bf16.mxu0 0
    %548 = vmatpush1.bf16.msra.mxu0 0
    %549 = vmatprep.subr.bf16.mxu0 0
    %550 = vmatpush1.bf16.msra.mxu0 0
    %551 = vmatprep.subr.bf16.mxu0 0
    %552 = vmatpush1.bf16.msra.mxu0 0
    %553 = vmatprep.subr.bf16.mxu0 0
    %554 = vmatpush1.bf16.msra.mxu0 0
    %555 = vmatprep.subr.bf16.mxu0 0
    %556 = vmatpush1.bf16.msra.mxu0 0
    %557 = vmatprep.subr.bf16.mxu0 0
    %558 = vmatpush1.bf16.msra.mxu0 0
    %559 = vmatprep.subr.bf16.mxu0 0
    %560 = vmatpush1.bf16.msra.mxu0 0
    %561 = vmatprep.subr.bf16.mxu0 0
    %562 = vmatpush1.bf16.msra.mxu0 0
    %563 = vmatprep.subr.bf16.mxu0 0
    %564 = vmatpush1.bf16.msra.mxu0 0
    %565 = vmatprep.subr.bf16.mxu0 0
    %566 = vmatpush1.bf16.msra.mxu0 0
    %567 = vmatprep.subr.bf16.mxu0 0
    %568 = vmatpush1.bf16.msra.mxu0 0
    %569 = vmatprep.mubr.bf16.mxu0 0
    %570 = vmatmul.mubr.bf16.gmra.mrb[0].mxu0 %v535
    %v571 = vpop.f32.mrb[0].mxu0
    %v572 = vadd.f32 %v520, %v571
    %v573 = vpop.f32.mrb[0].mxu0
    %v574 = vpop.f32.mrb[0].mxu0
    %v575 = vpop.f32.mrb[0].mxu0
    %576 = vdwg.mxu0
    %v577 = vlaneseq
    %v578 = vand.u32 %v577, 127
    %vm579 = vcmp.lt.s32.totalorder %v578, 16
    %v580 = vmax.f32 %v572, 0.0
    %vm581 = vcmp.ne.f32.partialorder %v572, %v572
    %v582 = vadd.f32 %v572, 0.0
    %v583 = vand.u32 2147483647, %v572
    %v584 = vsub.f32 0.0, %v583
    %v585 = vmul.f32 %v584, 1.442695
    %v586 = vpow.pop %v585
    %v587 = vadd.f32 %v586, 1.0
    %v588 = vlog2.pop %v587
    %v589 = vmul.f32 %v588, 0.6931472
    %v590 = vmul.f32 -0.5, %v586
    %v591 = vadd.f32 %v590, 1.0
    %v592 = vmul.f32 %v591, %v586
    %v593 = vand.u32 2147483647, %v586
    %vm594 = vcmp.lt.f32.partialorder %v593, 0.0004427343
    %v595 = vsel %vm594, %v592, %v589
    %v596 = vadd.f32 %v580, %v595
    %v597 = vsel %vm581, %v582, %v596
    %v598 = vsel %vm579, %v572, %v597
    %599 = vst.msk [vmem:[%s67] sm:$0xff] %vm246, %v598
    %v600 = vld [vmem:[%s21] sm:$0xf]
    %v601 = vld [vmem:[%s21 + $0x4] sm:$0xf]
    %v602 = vld [vmem:[%s21 + $0x8] sm:$0xf]
    %v603 = vld [vmem:[%s21 + $0xc] sm:$0xf]
    %v604 = vld [vmem:[%s21 + $0x10] sm:$0xf]
    %v605 = vld [vmem:[%s21 + $0x14] sm:$0xf]
    %v606 = vld [vmem:[%s21 + $0x18] sm:$0xf]
    %v607 = vld [vmem:[%s21 + $0x1c] sm:$0xf]
    %v608 = vld [vmem:[%s25] sm:$0x1]
    %v610 = vlaneseq
    %v611 = vshrl.u32 %v610, 7
    %v612 = vsub.s32 0, %v611
    %v613 = vrot.slane %v608, %v612
    %v623 = vunpack.c.l.b16 %v600
    %v624 = vunpack.c.l.b16 %v601
    %v625 = vunpack.c.l.b16 %v602
    %v626 = vunpack.c.l.b16 %v603
    %v627 = vunpack.c.l.b16 %v604
    %v628 = vunpack.c.l.b16 %v605
    %v629 = vunpack.c.l.b16 %v606
    %v630 = vunpack.c.l.b16 %v607
    %v631 = vpack.c.b16 %v624, %v623
    %v632 = vpack.c.b16 %v626, %v625
    %v633 = vpack.c.b16 %v628, %v627
    %v634 = vpack.c.b16 %v630, %v629
    %639 = vmatprep.subr.bf16.mxu0 0
    %640 = vmatpush1.bf16.msra.mxu0 %v631
    %641 = vmatprep.subr.bf16.mxu0 0
    %642 = vmatpush1.bf16.msra.mxu0 %v632
    %643 = vmatprep.subr.bf16.mxu0 0
    %644 = vmatpush1.bf16.msra.mxu0 %v633
    %645 = vmatprep.subr.bf16.mxu0 0
    %646 = vmatpush1.bf16.msra.mxu0 %v634
    %647 = vmatprep.subr.bf16.mxu0 0
    %648 = vmatpush1.bf16.msra.mxu0 0
    %649 = vmatprep.subr.bf16.mxu0 0
    %650 = vmatpush1.bf16.msra.mxu0 0
    %651 = vmatprep.subr.bf16.mxu0 0
    %652 = vmatpush1.bf16.msra.mxu0 0
    %653 = vmatprep.subr.bf16.mxu0 0
    %654 = vmatpush1.bf16.msra.mxu0 0
    %655 = vmatprep.subr.bf16.mxu0 0
    %656 = vmatpush1.bf16.msra.mxu0 0
    %657 = vmatprep.subr.bf16.mxu0 0
    %658 = vmatpush1.bf16.msra.mxu0 0
    %659 = vmatprep.subr.bf16.mxu0 0
    %660 = vmatpush1.bf16.msra.mxu0 0
    %661 = vmatprep.subr.bf16.mxu0 0
    %662 = vmatpush1.bf16.msra.mxu0 0
    %663 = vmatprep.subr.bf16.mxu0 0
    %664 = vmatpush1.bf16.msra.mxu0 0
    %665 = vmatprep.subr.bf16.mxu0 0
    %666 = vmatpush1.bf16.msra.mxu0 0
    %667 = vmatprep.subr.bf16.mxu0 0
    %668 = vmatpush1.bf16.msra.mxu0 0
    %669 = vmatprep.subr.bf16.mxu0 0
    %670 = vmatpush1.bf16.msra.mxu0 0
    %671 = vmatprep.mubr.bf16.mxu0 0
    %672 = vmatmul.mubr.bf16.gmra.mrb[0].mxu0 %v179
    %v673 = vpop.f32.mrb[0].mxu0
    %v674 = vadd.f32 %v613, %v673
    %v675 = vpop.f32.mrb[0].mxu0
    %v676 = vpop.f32.mrb[0].mxu0
    %v677 = vpop.f32.mrb[0].mxu0
    %678 = vdwg.mxu0
    %v680 = vcombine.high %v426, %v426
    %v682 = vunpack.c.l.s4 1966171168
    %v683 = vunpack.c.0.s8 %v682
    %v684 = vlaneseq
    %v685 = vshrl.u32 %v684, 7
    %v686 = vsub.s32 %v683, %v685
    %v687 = vrot.slane %v426, %v686
    %v689 = vunpack.c.l.s4 1966171168
    %v690 = vunpack.c.0.s8 %v689
    %v691 = vlaneseq
    %v692 = vshrl.u32 %v691, 7
    %v693 = vsub.s32 %v690, %v692
    %v694 = vrot.slane %v680, %v693
    %v695 = vcombine.high %v687, %v687
    %v696 = vcombine.high %v694, %v694
    %v698 = vunpack.c.l.s4 1966171168
    %v699 = vunpack.c.0.s8 %v698
    %v700 = vlaneseq
    %v701 = vshrl.u32 %v700, 7
    %v702 = vsub.s32 %v699, %v701
    %v703 = vrot.slane %v687, %v702
    %v705 = vunpack.c.l.s4 1966171168
    %v706 = vunpack.c.0.s8 %v705
    %v707 = vlaneseq
    %v708 = vshrl.u32 %v707, 7
    %v709 = vsub.s32 %v706, %v708
    %v710 = vrot.slane %v694, %v709
    %v712 = vunpack.c.l.s4 1966171168
    %v713 = vunpack.c.0.s8 %v712
    %v714 = vlaneseq
    %v715 = vshrl.u32 %v714, 7
    %v716 = vsub.s32 %v713, %v715
    %v717 = vrot.slane %v695, %v716
    %v719 = vunpack.c.l.s4 1966171168
    %v720 = vunpack.c.0.s8 %v719
    %v721 = vlaneseq
    %v722 = vshrl.u32 %v721, 7
    %v723 = vsub.s32 %v720, %v722
    %v724 = vrot.slane %v696, %v723
    %v725 = vcombine.high %v703, %v703
    %v726 = vcombine.high %v710, %v710
    %v727 = vcombine.high %v717, %v717
    %v728 = vcombine.high %v724, %v724
    %v729 = vlaneseq
    %v730 = vshrl.u32 %v729, 7
    %v731 = vsub.s32 0, %v730
    %v732 = vrot.slane %v703, %v731
    %v733 = vlaneseq
    %v734 = vshrl.u32 %v733, 7
    %v735 = vsub.s32 0, %v734
    %v736 = vrot.slane %v717, %v735
    %v737 = vlaneseq
    %v738 = vshrl.u32 %v737, 7
    %v739 = vsub.s32 0, %v738
    %v740 = vrot.slane %v725, %v739
    %v741 = vlaneseq
    %v742 = vshrl.u32 %v741, 7
    %v743 = vsub.s32 0, %v742
    %v744 = vrot.slane %v727, %v743
    %v745 = vlaneseq
    %v746 = vshrl.u32 %v745, 7
    %v747 = vsub.s32 0, %v746
    %v748 = vrot.slane %v710, %v747
    %v749 = vlaneseq
    %v750 = vshrl.u32 %v749, 7
    %v751 = vsub.s32 0, %v750
    %v752 = vrot.slane %v724, %v751
    %v753 = vlaneseq
    %v754 = vshrl.u32 %v753, 7
    %v755 = vsub.s32 0, %v754
    %v756 = vrot.slane %v726, %v755
    %v757 = vlaneseq
    %v758 = vshrl.u32 %v757, 7
    %v759 = vsub.s32 0, %v758
    %v760 = vrot.slane %v728, %v759
    %v769 = vadd.f32 %v674, %v732
    %v770 = vadd.f32 %v674, %v736
    %v771 = vadd.f32 %v674, %v740
    %v772 = vadd.f32 %v674, %v744
    %v773 = vadd.f32 %v674, %v748
    %v774 = vadd.f32 %v674, %v752
    %v775 = vadd.f32 %v674, %v756
    %v776 = vadd.f32 %v674, %v760
    %v777 = vmax.f32 %v769, 0.0
    %v778 = vmax.f32 %v770, 0.0
    %v779 = vmax.f32 %v771, 0.0
    %v780 = vmax.f32 %v772, 0.0
    %v781 = vmax.f32 %v773, 0.0
    %v782 = vmax.f32 %v774, 0.0
    %v783 = vmax.f32 %v775, 0.0
    %v784 = vmax.f32 %v776, 0.0
    %v785 = vld [vmem:[%s27] sm:$0xf]
    %v786 = vld [vmem:[%s27 + $0x4] sm:$0xf]
    %v787 = vld [vmem:[%s27 + $0x8] sm:$0xf]
    %v788 = vld [vmem:[%s27 + $0xc] sm:$0xf]
    %v789 = vpack.c.bf16 %v778, %v777
    %v790 = vpack.c.bf16 %v780, %v779
    %v791 = vpack.c.bf16 %v782, %v781
    %v792 = vpack.c.bf16 %v784, %v783
    %v793 = vld [vmem:[%s29] sm:$0x1]
    %v795 = vlaneseq
    %v796 = vshrl.u32 %v795, 7
    %v797 = vsub.s32 0, %v796
    %v798 = vrot.slane %v793, %v797
    %v804 = vunpack.c.l.b16 %v785
    %v805 = vunpack.c.l.b16 %v786
    %v806 = vunpack.c.l.b16 %v787
    %v807 = vunpack.c.l.b16 %v788
    %v808 = vpack.c.b16 %v805, %v804
    %v809 = vpack.c.b16 %v807, %v806
    %v813 = vsel %vm246, %v789, 0
    %v816 = vsel %vm246, %v790, 0
    %v819 = vsel %vm246, %v791, 0
    %v822 = vsel %vm246, %v792, 0
    %824 = vmatprep.subr.bf16.mxu0 0
    %825 = vmatpush1.bf16.msra.mxu0 %v808
    %826 = vmatprep.subr.bf16.mxu0 0
    %827 = vmatpush1.bf16.msra.mxu0 %v809
    %828 = vmatprep.subr.bf16.mxu0 0
    %829 = vmatpush1.bf16.msra.mxu0 0
    %830 = vmatprep.subr.bf16.mxu0 0
    %831 = vmatpush1.bf16.msra.mxu0 0
    %832 = vmatprep.subr.bf16.mxu0 0
    %833 = vmatpush1.bf16.msra.mxu0 0
    %834 = vmatprep.subr.bf16.mxu0 0
    %835 = vmatpush1.bf16.msra.mxu0 0
    %836 = vmatprep.subr.bf16.mxu0 0
    %837 = vmatpush1.bf16.msra.mxu0 0
    %838 = vmatprep.subr.bf16.mxu0 0
    %839 = vmatpush1.bf16.msra.mxu0 0
    %840 = vmatprep.subr.bf16.mxu0 0
    %841 = vmatpush1.bf16.msra.mxu0 0
    %842 = vmatprep.subr.bf16.mxu0 0
    %843 = vmatpush1.bf16.msra.mxu0 0
    %844 = vmatprep.subr.bf16.mxu0 0
    %845 = vmatpush1.bf16.msra.mxu0 0
    %846 = vmatprep.subr.bf16.mxu0 0
    %847 = vmatpush1.bf16.msra.mxu0 0
    %848 = vmatprep.subr.bf16.mxu0 0
    %849 = vmatpush1.bf16.msra.mxu0 0
    %850 = vmatprep.subr.bf16.mxu0 0
    %851 = vmatpush1.bf16.msra.mxu0 0
    %852 = vmatprep.subr.bf16.mxu0 0
    %853 = vmatpush1.bf16.msra.mxu0 0
    %854 = vmatprep.subr.bf16.mxu0 0
    %855 = vmatpush1.bf16.msra.mxu0 0
    %856 = vmatprep.mubr.bf16.mxu0 0
    %857 = vmatmul.mubr.bf16.gmra.mrb[0].mxu0 %v813
    %v858 = vpop.f32.mrb[0].mxu0
    %v859 = vadd.f32 %v798, %v858
    %v860 = vpop.f32.mrb[0].mxu0
    %v861 = vpop.f32.mrb[0].mxu0
    %v862 = vadd.f32 %v798, %v861
    %v863 = vpop.f32.mrb[0].mxu0
    %864 = vmatprep.mubr.bf16.mxu0 0
    %865 = vmatmul.mubr.bf16.gmra.mrb[0].mxu0 %v816
    %v866 = vpop.f32.mrb[0].mxu0
    %v867 = vadd.f32 %v798, %v866
    %v868 = vpop.f32.mrb[0].mxu0
    %v869 = vpop.f32.mrb[0].mxu0
    %v870 = vadd.f32 %v798, %v869
    %v871 = vpop.f32.mrb[0].mxu0
    %872 = vmatprep.mubr.bf16.mxu0 0
    %873 = vmatmul.mubr.bf16.gmra.mrb[0].mxu0 %v819
    %v874 = vpop.f32.mrb[0].mxu0
    %v875 = vadd.f32 %v798, %v874
    %v876 = vpop.f32.mrb[0].mxu0
    %v877 = vpop.f32.mrb[0].mxu0
    %v878 = vadd.f32 %v798, %v877
    %v879 = vpop.f32.mrb[0].mxu0
    %880 = vmatprep.mubr.bf16.mxu0 0
    %881 = vmatmul.mubr.bf16.gmra.mrb[0].mxu0 %v822
    %v882 = vpop.f32.mrb[0].mxu0
    %v883 = vadd.f32 %v798, %v882
    %v884 = vpop.f32.mrb[0].mxu0
    %v885 = vpop.f32.mrb[0].mxu0
    %v886 = vadd.f32 %v798, %v885
    %v887 = vpop.f32.mrb[0].mxu0
    %888 = vdwg.mxu0
    %v889 = vmax.f32 %v859, 0.0
    %v890 = vmax.f32 %v862, 0.0
    %v891 = vmax.f32 %v867, 0.0
    %v892 = vmax.f32 %v870, 0.0
    %v893 = vmax.f32 %v875, 0.0
    %v894 = vmax.f32 %v878, 0.0
    %v895 = vmax.f32 %v883, 0.0
    %v896 = vmax.f32 %v886, 0.0
    %v897 = vld [vmem:[%s31] sm:$0xf]
    %v898 = vld [vmem:[%s31 + $0x4] sm:$0xf]
    %v899 = vld [vmem:[%s31 + $0x8] sm:$0xf]
    %v900 = vld [vmem:[%s31 + $0xc] sm:$0xf]
    %v901 = vpack.c.bf16 %v890, %v889
    %v902 = vpack.c.bf16 %v892, %v891
    %v903 = vpack.c.bf16 %v894, %v893
    %v904 = vpack.c.bf16 %v896, %v895
    %v905 = vld [vmem:[%s33] sm:$0x1]
    %v907 = vlaneseq
    %v908 = vshrl.u32 %v907, 7
    %v909 = vsub.s32 0, %v908
    %v910 = vrot.slane %v905, %v909
    %v916 = vunpack.c.l.b16 %v897
    %v917 = vunpack.c.l.b16 %v898
    %v918 = vunpack.c.l.b16 %v899
    %v919 = vunpack.c.l.b16 %v900
    %v920 = vpack.c.b16 %v917, %v916
    %v921 = vpack.c.b16 %v919, %v918
    %v925 = vsel %vm246, %v901, 0
    %v928 = vsel %vm246, %v902, 0
    %v931 = vsel %vm246, %v903, 0
    %v934 = vsel %vm246, %v904, 0
    %936 = vmatprep.subr.bf16.mxu0 0
    %937 = vmatpush1.bf16.msra.mxu0 %v920
    %938 = vmatprep.subr.bf16.mxu0 0
    %939 = vmatpush1.bf16.msra.mxu0 %v921
    %940 = vmatprep.subr.bf16.mxu0 0
    %941 = vmatpush1.bf16.msra.mxu0 0
    %942 = vmatprep.subr.bf16.mxu0 0
    %943 = vmatpush1.bf16.msra.mxu0 0
    %944 = vmatprep.subr.bf16.mxu0 0
    %945 = vmatpush1.bf16.msra.mxu0 0
    %946 = vmatprep.subr.bf16.mxu0 0
    %947 = vmatpush1.bf16.msra.mxu0 0
    %948 = vmatprep.subr.bf16.mxu0 0
    %949 = vmatpush1.bf16.msra.mxu0 0
    %950 = vmatprep.subr.bf16.mxu0 0
    %951 = vmatpush1.bf16.msra.mxu0 0
    %952 = vmatprep.subr.bf16.mxu0 0
    %953 = vmatpush1.bf16.msra.mxu0 0
    %954 = vmatprep.subr.bf16.mxu0 0
    %955 = vmatpush1.bf16.msra.mxu0 0
    %956 = vmatprep.subr.bf16.mxu0 0
    %957 = vmatpush1.bf16.msra.mxu0 0
    %958 = vmatprep.subr.bf16.mxu0 0
    %959 = vmatpush1.bf16.msra.mxu0 0
    %960 = vmatprep.subr.bf16.mxu0 0
    %961 = vmatpush1.bf16.msra.mxu0 0
    %962 = vmatprep.subr.bf16.mxu0 0
    %963 = vmatpush1.bf16.msra.mxu0 0
    %964 = vmatprep.subr.bf16.mxu0 0
    %965 = vmatpush1.bf16.msra.mxu0 0
    %966 = vmatprep.subr.bf16.mxu0 0
    %967 = vmatpush1.bf16.msra.mxu0 0
    %968 = vmatprep.mubr.bf16.mxu0 0
    %969 = vmatmul.mubr.bf16.gmra.mrb[0].mxu0 %v925
    %v970 = vpop.f32.mrb[0].mxu0
    %v971 = vadd.f32 %v910, %v970
    %v972 = vpop.f32.mrb[0].mxu0
    %v973 = vpop.f32.mrb[0].mxu0
    %v974 = vadd.f32 %v910, %v973
    %v975 = vpop.f32.mrb[0].mxu0
    %976 = vmatprep.mubr.bf16.mxu0 0
    %977 = vmatmul.mubr.bf16.gmra.mrb[0].mxu0 %v928
    %v978 = vpop.f32.mrb[0].mxu0
    %v979 = vadd.f32 %v910, %v978
    %v980 = vpop.f32.mrb[0].mxu0
    %v981 = vpop.f32.mrb[0].mxu0
    %v982 = vadd.f32 %v910, %v981
    %v983 = vpop.f32.mrb[0].mxu0
    %984 = vmatprep.mubr.bf16.mxu0 0
    %985 = vmatmul.mubr.bf16.gmra.mrb[0].mxu0 %v931
    %v986 = vpop.f32.mrb[0].mxu0
    %v987 = vadd.f32 %v910, %v986
    %v988 = vpop.f32.mrb[0].mxu0
    %v989 = vpop.f32.mrb[0].mxu0
    %v990 = vadd.f32 %v910, %v989
    %v991 = vpop.f32.mrb[0].mxu0
    %992 = vmatprep.mubr.bf16.mxu0 0
    %993 = vmatmul.mubr.bf16.gmra.mrb[0].mxu0 %v934
    %v994 = vpop.f32.mrb[0].mxu0
    %v995 = vadd.f32 %v910, %v994
    %v996 = vpop.f32.mrb[0].mxu0
    %v997 = vpop.f32.mrb[0].mxu0
    %v998 = vadd.f32 %v910, %v997
    %v999 = vpop.f32.mrb[0].mxu0
    %1000 = vdwg.mxu0
    %v1001 = vmax.f32 %v971, 0.0
    %v1002 = vmax.f32 %v974, 0.0
    %v1003 = vmax.f32 %v979, 0.0
    %v1004 = vmax.f32 %v982, 0.0
    %v1005 = vmax.f32 %v987, 0.0
    %v1006 = vmax.f32 %v990, 0.0
    %v1007 = vmax.f32 %v995, 0.0
    %v1008 = vmax.f32 %v998, 0.0
    %vm1009 = vcmp.ne.f32.partialorder %v971, %v971
    %vm1010 = vcmp.ne.f32.partialorder %v974, %v974
    %vm1011 = vcmp.ne.f32.partialorder %v979, %v979
    %vm1012 = vcmp.ne.f32.partialorder %v982, %v982
    %vm1013 = vcmp.ne.f32.partialorder %v987, %v987
    %vm1014 = vcmp.ne.f32.partialorder %v990, %v990
    %vm1015 = vcmp.ne.f32.partialorder %v995, %v995
    %vm1016 = vcmp.ne.f32.partialorder %v998, %v998
    %v1017 = vadd.f32 %v971, 0.0
    %v1018 = vadd.f32 %v974, 0.0
    %v1019 = vadd.f32 %v979, 0.0
    %v1020 = vadd.f32 %v982, 0.0
    %v1021 = vadd.f32 %v987, 0.0
    %v1022 = vadd.f32 %v990, 0.0
    %v1023 = vadd.f32 %v995, 0.0
    %v1024 = vadd.f32 %v998, 0.0
    %v1025 = vand.u32 2147483647, %v971
    %v1026 = vand.u32 2147483647, %v974
    %v1027 = vand.u32 2147483647, %v979
    %v1028 = vand.u32 2147483647, %v982
    %v1029 = vand.u32 2147483647, %v987
    %v1030 = vand.u32 2147483647, %v990
    %v1031 = vand.u32 2147483647, %v995
    %v1032 = vand.u32 2147483647, %v998
    %v1033 = vsub.f32 0.0, %v1025
    %v1034 = vsub.f32 0.0, %v1026
    %v1035 = vsub.f32 0.0, %v1027
    %v1036 = vsub.f32 0.0, %v1028
    %v1037 = vsub.f32 0.0, %v1029
    %v1038 = vsub.f32 0.0, %v1030
    %v1039 = vsub.f32 0.0, %v1031
    %v1040 = vsub.f32 0.0, %v1032
    %v1041 = vmul.f32 %v1033, 1.442695
    %v1042 = vpow.pop %v1041
    %v1043 = vmul.f32 %v1034, 1.442695
    %v1044 = vpow.pop %v1043
    %v1045 = vmul.f32 %v1035, 1.442695
    %v1046 = vpow.pop %v1045
    %v1047 = vmul.f32 %v1036, 1.442695
    %v1048 = vpow.pop %v1047
    %v1049 = vmul.f32 %v1037, 1.442695
    %v1050 = vpow.pop %v1049
    %v1051 = vmul.f32 %v1038, 1.442695
    %v1052 = vpow.pop %v1051
    %v1053 = vmul.f32 %v1039, 1.442695
    %v1054 = vpow.pop %v1053
    %v1055 = vmul.f32 %v1040, 1.442695
    %v1056 = vpow.pop %v1055
    %v1057 = vadd.f32 %v1042, 1.0
    %v1058 = vlog2.pop %v1057
    %v1059 = vmul.f32 %v1058, 0.6931472
    %v1060 = vmul.f32 -0.5, %v1042
    %v1061 = vadd.f32 %v1060, 1.0
    %v1062 = vmul.f32 %v1061, %v1042
    %v1063 = vand.u32 2147483647, %v1042
    %vm1064 = vcmp.lt.f32.partialorder %v1063, 0.0004427343
    %v1065 = vsel %vm1064, %v1062, %v1059
    %v1066 = vadd.f32 %v1044, 1.0
    %v1067 = vlog2.pop %v1066
    %v1068 = vmul.f32 %v1067, 0.6931472
    %v1069 = vmul.f32 -0.5, %v1044
    %v1070 = vadd.f32 %v1069, 1.0
    %v1071 = vmul.f32 %v1070, %v1044
    %v1072 = vand.u32 2147483647, %v1044
    %vm1073 = vcmp.lt.f32.partialorder %v1072, 0.0004427343
    %v1074 = vsel %vm1073, %v1071, %v1068
    %v1075 = vadd.f32 %v1046, 1.0
    %v1076 = vlog2.pop %v1075
    %v1077 = vmul.f32 %v1076, 0.6931472
    %v1078 = vmul.f32 -0.5, %v1046
    %v1079 = vadd.f32 %v1078, 1.0
    %v1080 = vmul.f32 %v1079, %v1046
    %v1081 = vand.u32 2147483647, %v1046
    %vm1082 = vcmp.lt.f32.partialorder %v1081, 0.0004427343
    %v1083 = vsel %vm1082, %v1080, %v1077
    %v1084 = vadd.f32 %v1048, 1.0
    %v1085 = vlog2.pop %v1084
    %v1086 = vmul.f32 %v1085, 0.6931472
    %v1087 = vmul.f32 -0.5, %v1048
    %v1088 = vadd.f32 %v1087, 1.0
    %v1089 = vmul.f32 %v1088, %v1048
    %v1090 = vand.u32 2147483647, %v1048
    %vm1091 = vcmp.lt.f32.partialorder %v1090, 0.0004427343
    %v1092 = vsel %vm1091, %v1089, %v1086
    %v1093 = vadd.f32 %v1050, 1.0
    %v1094 = vlog2.pop %v1093
    %v1095 = vmul.f32 %v1094, 0.6931472
    %v1096 = vmul.f32 -0.5, %v1050
    %v1097 = vadd.f32 %v1096, 1.0
    %v1098 = vmul.f32 %v1097, %v1050
    %v1099 = vand.u32 2147483647, %v1050
    %vm1100 = vcmp.lt.f32.partialorder %v1099, 0.0004427343
    %v1101 = vsel %vm1100, %v1098, %v1095
    %v1102 = vadd.f32 %v1052, 1.0
    %v1103 = vlog2.pop %v1102
    %v1104 = vmul.f32 %v1103, 0.6931472
    %v1105 = vmul.f32 -0.5, %v1052
    %v1106 = vadd.f32 %v1105, 1.0
    %v1107 = vmul.f32 %v1106, %v1052
    %v1108 = vand.u32 2147483647, %v1052
    %vm1109 = vcmp.lt.f32.partialorder %v1108, 0.0004427343
    %v1110 = vsel %vm1109, %v1107, %v1104
    %v1111 = vadd.f32 %v1054, 1.0
    %v1112 = vlog2.pop %v1111
    %v1113 = vmul.f32 %v1112, 0.6931472
    %v1114 = vmul.f32 -0.5, %v1054
    %v1115 = vadd.f32 %v1114, 1.0
    %v1116 = vmul.f32 %v1115, %v1054
    %v1117 = vand.u32 2147483647, %v1054
    %vm1118 = vcmp.lt.f32.partialorder %v1117, 0.0004427343
    %v1119 = vsel %vm1118, %v1116, %v1113
    %v1120 = vadd.f32 %v1056, 1.0
    %v1121 = vlog2.pop %v1120
    %v1122 = vmul.f32 %v1121, 0.6931472
    %v1123 = vmul.f32 -0.5, %v1056
    %v1124 = vadd.f32 %v1123, 1.0
    %v1125 = vmul.f32 %v1124, %v1056
    %v1126 = vand.u32 2147483647, %v1056
    %vm1127 = vcmp.lt.f32.partialorder %v1126, 0.0004427343
    %v1128 = vsel %vm1127, %v1125, %v1122
    %v1129 = vadd.f32 %v1001, %v1065
    %v1130 = vadd.f32 %v1002, %v1074
    %v1131 = vadd.f32 %v1003, %v1083
    %v1132 = vadd.f32 %v1004, %v1092
    %v1133 = vadd.f32 %v1005, %v1101
    %v1134 = vadd.f32 %v1006, %v1110
    %v1135 = vadd.f32 %v1007, %v1119
    %v1136 = vadd.f32 %v1008, %v1128
    %v1137 = vsel %vm1009, %v1017, %v1129
    %v1138 = vsel %vm1010, %v1018, %v1130
    %v1139 = vsel %vm1011, %v1019, %v1131
    %v1140 = vsel %vm1012, %v1020, %v1132
    %v1141 = vsel %vm1013, %v1021, %v1133
    %v1142 = vsel %vm1014, %v1022, %v1134
    %v1143 = vsel %vm1015, %v1023, %v1135
    %v1144 = vsel %vm1016, %v1024, %v1136
    %v1145 = vsel %vm579, %v971, %v1137
    %v1146 = vsel %vm579, %v974, %v1138
    %v1147 = vsel %vm579, %v979, %v1139
    %v1148 = vsel %vm579, %v982, %v1140
    %v1149 = vsel %vm579, %v987, %v1141
    %v1150 = vsel %vm579, %v990, %v1142
    %v1151 = vsel %vm579, %v995, %v1143
    %v1152 = vsel %vm579, %v998, %v1144
    %1153 = vst.msk [vmem:[%s63] sm:$0xff] %vm246, %v1145
    %1154 = vst.msk [vmem:[%s63 + $0x8] sm:$0xff] %vm246, %v1146
    %1155 = vst.msk [vmem:[%s63 + $0x10] sm:$0xff] %vm246, %v1147
    %1156 = vst.msk [vmem:[%s63 + $0x18] sm:$0xff] %vm246, %v1148
    %1157 = vst.msk [vmem:[%s63 + $0x20] sm:$0xff] %vm246, %v1149
    %1158 = vst.msk [vmem:[%s63 + $0x28] sm:$0xff] %vm246, %v1150
    %1159 = vst.msk [vmem:[%s63 + $0x30] sm:$0xff] %vm246, %v1151
    %1160 = vst.msk [vmem:[%s63 + $0x38] sm:$0xff] %vm246, %v1152
    %v1161 = vrsqrt.pop %v1145
    %v1162 = vmul.f32 %v1145, %v1161
    %vm1163 = vcmp.eq.f32.partialorder %v1145, inf
    %v1164 = vsel %vm1163, %v1145, %v1162
    %vm1165 = vcmp.eq.f32.partialorder %v1145, 0.0
    %v1166 = vand.u32 %v1145, 2147483648
    %v1167 = vsel %vm1165, %v1166, %v1164
    %v1168 = vrsqrt.pop %v1146
    %v1169 = vmul.f32 %v1146, %v1168
    %vm1170 = vcmp.eq.f32.partialorder %v1146, inf
    %v1171 = vsel %vm1170, %v1146, %v1169
    %vm1172 = vcmp.eq.f32.partialorder %v1146, 0.0
    %v1173 = vand.u32 %v1146, 2147483648
    %v1174 = vsel %vm1172, %v1173, %v1171
    %v1175 = vrsqrt.pop %v1147
    %v1176 = vmul.f32 %v1147, %v1175
    %vm1177 = vcmp.eq.f32.partialorder %v1147, inf
    %v1178 = vsel %vm1177, %v1147, %v1176
    %vm1179 = vcmp.eq.f32.partialorder %v1147, 0.0
    %v1180 = vand.u32 %v1147, 2147483648
    %v1181 = vsel %vm1179, %v1180, %v1178
    %v1182 = vrsqrt.pop %v1148
    %v1183 = vmul.f32 %v1148, %v1182
    %vm1184 = vcmp.eq.f32.partialorder %v1148, inf
    %v1185 = vsel %vm1184, %v1148, %v1183
    %vm1186 = vcmp.eq.f32.partialorder %v1148, 0.0
    %v1187 = vand.u32 %v1148, 2147483648
    %v1188 = vsel %vm1186, %v1187, %v1185
    %v1189 = vrsqrt.pop %v1149
    %v1190 = vmul.f32 %v1149, %v1189
    %vm1191 = vcmp.eq.f32.partialorder %v1149, inf
    %v1192 = vsel %vm1191, %v1149, %v1190
    %vm1193 = vcmp.eq.f32.partialorder %v1149, 0.0
    %v1194 = vand.u32 %v1149, 2147483648
    %v1195 = vsel %vm1193, %v1194, %v1192
    %v1196 = vrsqrt.pop %v1150
    %v1197 = vmul.f32 %v1150, %v1196
    %vm1198 = vcmp.eq.f32.partialorder %v1150, inf
    %v1199 = vsel %vm1198, %v1150, %v1197
    %vm1200 = vcmp.eq.f32.partialorder %v1150, 0.0
    %v1201 = vand.u32 %v1150, 2147483648
    %v1202 = vsel %vm1200, %v1201, %v1199
    %v1203 = vrsqrt.pop %v1151
    %v1204 = vmul.f32 %v1151, %v1203
    %vm1205 = vcmp.eq.f32.partialorder %v1151, inf
    %v1206 = vsel %vm1205, %v1151, %v1204
    %vm1207 = vcmp.eq.f32.partialorder %v1151, 0.0
    %v1208 = vand.u32 %v1151, 2147483648
    %v1209 = vsel %vm1207, %v1208, %v1206
    %v1210 = vrsqrt.pop %v1152
    %v1211 = vmul.f32 %v1152, %v1210
    %vm1212 = vcmp.eq.f32.partialorder %v1152, inf
    %v1213 = vsel %vm1212, %v1152, %v1211
    %vm1214 = vcmp.eq.f32.partialorder %v1152, 0.0
    %v1215 = vand.u32 %v1152, 2147483648
    %v1216 = vsel %vm1214, %v1215, %v1213
    %v1217 = vld [vmem:[%s3] sm:$0xff]
    %v1218 = vld [vmem:[%s3 + $0x8] sm:$0xff]
    %v1219 = vld [vmem:[%s3 + $0x10] sm:$0xff]
    %v1220 = vld [vmem:[%s3 + $0x18] sm:$0xff]
    %v1221 = vld [vmem:[%s3 + $0x20] sm:$0xff]
    %v1222 = vld [vmem:[%s3 + $0x28] sm:$0xff]
    %v1223 = vld [vmem:[%s3 + $0x30] sm:$0xff]
    %v1224 = vld [vmem:[%s3 + $0x38] sm:$0xff]
    %1233 = vrot.lane.b32.xlu0 %v1217, 16
    %v1234 = vpop.permute.xlu0 %1233
    %1235 = vrot.lane.b32.xlu0 %v1218, 16
    %v1236 = vpop.permute.xlu0 %1235
    %1237 = vrot.lane.b32.xlu0 %v1219, 16
    %v1238 = vpop.permute.xlu0 %1237
    %1239 = vrot.lane.b32.xlu0 %v1220, 16
    %v1240 = vpop.permute.xlu0 %1239
    %1241 = vrot.lane.b32.xlu0 %v1221, 16
    %v1242 = vpop.permute.xlu0 %1241
    %1243 = vrot.lane.b32.xlu0 %v1222, 16
    %v1244 = vpop.permute.xlu0 %1243
    %1245 = vrot.lane.b32.xlu0 %v1223, 16
    %v1246 = vpop.permute.xlu0 %1245
    %1247 = vrot.lane.b32.xlu0 %v1224, 16
    %v1248 = vpop.permute.xlu0 %1247
    %v1257 = vmul.f32 %v1167, %v1234
    %v1258 = vmul.f32 %v1174, %v1236
    %v1259 = vmul.f32 %v1181, %v1238
    %v1260 = vmul.f32 %v1188, %v1240
    %v1261 = vmul.f32 %v1195, %v1242
    %v1262 = vmul.f32 %v1202, %v1244
    %v1263 = vmul.f32 %v1209, %v1246
    %v1264 = vmul.f32 %v1216, %v1248
    %1273 = vrot.lane.b32.xlu0 %v1257, 112
    %v1274 = vpop.permute.xlu0 %1273
    %1275 = vrot.lane.b32.xlu0 %v1258, 112
    %v1276 = vpop.permute.xlu0 %1275
    %1277 = vrot.lane.b32.xlu0 %v1259, 112
    %v1278 = vpop.permute.xlu0 %1277
    %1279 = vrot.lane.b32.xlu0 %v1260, 112
    %v1280 = vpop.permute.xlu0 %1279
    %1281 = vrot.lane.b32.xlu0 %v1261, 112
    %v1282 = vpop.permute.xlu0 %1281
    %1283 = vrot.lane.b32.xlu0 %v1262, 112
    %v1284 = vpop.permute.xlu0 %1283
    %1285 = vrot.lane.b32.xlu0 %v1263, 112
    %v1286 = vpop.permute.xlu0 %1285
    %1287 = vrot.lane.b32.xlu0 %v1264, 112
    %v1288 = vpop.permute.xlu0 %1287
    %v1297 = vadd.f32 %v1145, %v1274
    %v1298 = vadd.f32 %v1146, %v1276
    %v1299 = vadd.f32 %v1147, %v1278
    %v1300 = vadd.f32 %v1148, %v1280
    %v1301 = vadd.f32 %v1149, %v1282
    %v1302 = vadd.f32 %v1150, %v1284
    %v1303 = vadd.f32 %v1151, %v1286
    %v1304 = vadd.f32 %v1152, %v1288
    %vm1305 = vcmask 130048
    %1306 = vst.msk [vmem:[#allocation6] sm:$0xff] %vm1305, %v1297
    %1307 = vst.msk [vmem:[#allocation6 + $0x8] sm:$0xff] %vm1305, %v1298
    %1308 = vst.msk [vmem:[#allocation6 + $0x10] sm:$0xff] %vm1305, %v1299
    %1309 = vst.msk [vmem:[#allocation6 + $0x18] sm:$0xff] %vm1305, %v1300
    %1310 = vst.msk [vmem:[#allocation6 + $0x20] sm:$0xff] %vm1305, %v1301
    %1311 = vst.msk [vmem:[#allocation6 + $0x28] sm:$0xff] %vm1305, %v1302
    %1312 = vst.msk [vmem:[#allocation6 + $0x30] sm:$0xff] %vm1305, %v1303
    %1313 = vst.msk [vmem:[#allocation6 + $0x38] sm:$0xff] %vm1305, %v1304
    %v1314 = vld [vmem:[%s47] sm:$0xf]
    %v1315 = vld [vmem:[%s47 + $0x4] sm:$0xf]
    %v1316 = vpack.c.bf16 %v1298, %v1297
    %v1317 = vpack.c.bf16 %v1300, %v1299
    %v1318 = vpack.c.bf16 %v1302, %v1301
    %v1319 = vpack.c.bf16 %v1304, %v1303
    %v1320 = vld [vmem:[%s49] sm:$0x1]
    %v1322 = vlaneseq
    %v1323 = vshrl.u32 %v1322, 7
    %v1324 = vsub.s32 0, %v1323
    %v1325 = vrot.slane %v1320, %v1324
    %v1329 = vunpack.c.l.b16 %v1314
    %v1330 = vunpack.c.l.b16 %v1315
    %v1331 = vpack.c.b16 %v1330, %v1329
    %v1334 = vsel %vm1305, %v1316, 0
    %v1337 = vsel %vm1305, %v1317, 0
    %v1340 = vsel %vm1305, %v1318, 0
    %v1343 = vsel %vm1305, %v1319, 0
    %1345 = vmatprep.subr.bf16.mxu0 0
    %1346 = vmatpush1.bf16.msra.mxu0 %v1331
    %1347 = vmatprep.subr.bf16.mxu0 0
    %1348 = vmatpush1.bf16.msra.mxu0 0
    %1349 = vmatprep.subr.bf16.mxu0 0
    %1350 = vmatpush1.bf16.msra.mxu0 0
    %1351 = vmatprep.subr.bf16.mxu0 0
    %1352 = vmatpush1.bf16.msra.mxu0 0
    %1353 = vmatprep.subr.bf16.mxu0 0
    %1354 = vmatpush1.bf16.msra.mxu0 0
    %1355 = vmatprep.subr.bf16.mxu0 0
    %1356 = vmatpush1.bf16.msra.mxu0 0
    %1357 = vmatprep.subr.bf16.mxu0 0
    %1358 = vmatpush1.bf16.msra.mxu0 0
    %1359 = vmatprep.subr.bf16.mxu0 0
    %1360 = vmatpush1.bf16.msra.mxu0 0
    %1361 = vmatprep.subr.bf16.mxu0 0
    %1362 = vmatpush1.bf16.msra.mxu0 0
    %1363 = vmatprep.subr.bf16.mxu0 0
    %1364 = vmatpush1.bf16.msra.mxu0 0
    %1365 = vmatprep.subr.bf16.mxu0 0
    %1366 = vmatpush1.bf16.msra.mxu0 0
    %1367 = vmatprep.subr.bf16.mxu0 0
    %1368 = vmatpush1.bf16.msra.mxu0 0
    %1369 = vmatprep.subr.bf16.mxu0 0
    %1370 = vmatpush1.bf16.msra.mxu0 0
    %1371 = vmatprep.subr.bf16.mxu0 0
    %1372 = vmatpush1.bf16.msra.mxu0 0
    %1373 = vmatprep.subr.bf16.mxu0 0
    %1374 = vmatpush1.bf16.msra.mxu0 0
    %1375 = vmatprep.subr.bf16.mxu0 0
    %1376 = vmatpush1.bf16.msra.mxu0 0
    %1377 = vmatprep.mubr.bf16.mxu0 0
    %1378 = vmatmul.mubr.bf16.gmra.mrb[0].mxu0 %v1334
    %v1379 = vpop.f32.mrb[0].mxu0
    %v1380 = vadd.f32 %v1325, %v1379
    %v1381 = vpop.f32.mrb[0].mxu0
    %v1382 = vpop.f32.mrb[0].mxu0
    %v1383 = vadd.f32 %v1325, %v1382
    %v1384 = vpop.f32.mrb[0].mxu0
    %1385 = vmatprep.mubr.bf16.mxu0 0
    %1386 = vmatmul.mubr.bf16.gmra.mrb[0].mxu0 %v1337
    %v1387 = vpop.f32.mrb[0].mxu0
    %v1388 = vadd.f32 %v1325, %v1387
    %v1389 = vpop.f32.mrb[0].mxu0
    %v1390 = vpop.f32.mrb[0].mxu0
    %v1391 = vadd.f32 %v1325, %v1390
    %v1392 = vpop.f32.mrb[0].mxu0
    %1393 = vmatprep.mubr.bf16.mxu0 0
    %1394 = vmatmul.mubr.bf16.gmra.mrb[0].mxu0 %v1340
    %v1395 = vpop.f32.mrb[0].mxu0
    %v1396 = vadd.f32 %v1325, %v1395
    %v1397 = vpop.f32.mrb[0].mxu0
    %v1398 = vpop.f32.mrb[0].mxu0
    %v1399 = vadd.f32 %v1325, %v1398
    %v1400 = vpop.f32.mrb[0].mxu0
    %1401 = vmatprep.mubr.bf16.mxu0 0
    %1402 = vmatmul.mubr.bf16.gmra.mrb[0].mxu0 %v1343
    %v1403 = vpop.f32.mrb[0].mxu0
    %v1404 = vadd.f32 %v1325, %v1403
    %v1405 = vpop.f32.mrb[0].mxu0
    %v1406 = vpop.f32.mrb[0].mxu0
    %v1407 = vadd.f32 %v1325, %v1406
    %v1408 = vpop.f32.mrb[0].mxu0
    %1409 = vdwg.mxu0
    %v1410 = vmax.f32 %v1380, 0.0
    %v1411 = vmax.f32 %v1383, 0.0
    %v1412 = vmax.f32 %v1388, 0.0
    %v1413 = vmax.f32 %v1391, 0.0
    %v1414 = vmax.f32 %v1396, 0.0
    %v1415 = vmax.f32 %v1399, 0.0
    %v1416 = vmax.f32 %v1404, 0.0
    %v1417 = vmax.f32 %v1407, 0.0
    %v1418 = vld [vmem:[%s51] sm:$0xf]
    %v1419 = vld [vmem:[%s51 + $0x4] sm:$0xf]
    %v1420 = vld [vmem:[%s51 + $0x8] sm:$0xf]
    %v1421 = vld [vmem:[%s51 + $0xc] sm:$0xf]
    %v1422 = vpack.c.bf16 %v1411, %v1410
    %v1423 = vpack.c.bf16 %v1413, %v1412
    %v1424 = vpack.c.bf16 %v1415, %v1414
    %v1425 = vpack.c.bf16 %v1417, %v1416
    %v1426 = vld [vmem:[%s53] sm:$0x1]
    %v1428 = vlaneseq
    %v1429 = vshrl.u32 %v1428, 7
    %v1430 = vsub.s32 0, %v1429
    %v1431 = vrot.slane %v1426, %v1430
    %v1437 = vunpack.c.l.b16 %v1418
    %v1438 = vunpack.c.l.b16 %v1419
    %v1439 = vunpack.c.l.b16 %v1420
    %v1440 = vunpack.c.l.b16 %v1421
    %v1441 = vpack.c.b16 %v1438, %v1437
    %v1442 = vpack.c.b16 %v1440, %v1439
    %v1446 = vsel %vm246, %v1422, 0
    %v1449 = vsel %vm246, %v1423, 0
    %v1452 = vsel %vm246, %v1424, 0
    %v1455 = vsel %vm246, %v1425, 0
    %1457 = vmatprep.subr.bf16.mxu0 0
    %1458 = vmatpush1.bf16.msra.mxu0 %v1441
    %1459 = vmatprep.subr.bf16.mxu0 0
    %1460 = vmatpush1.bf16.msra.mxu0 %v1442
    %1461 = vmatprep.subr.bf16.mxu0 0
    %1462 = vmatpush1.bf16.msra.mxu0 0
    %1463 = vmatprep.subr.bf16.mxu0 0
    %1464 = vmatpush1.bf16.msra.mxu0 0
    %1465 = vmatprep.subr.bf16.mxu0 0
    %1466 = vmatpush1.bf16.msra.mxu0 0
    %1467 = vmatprep.subr.bf16.mxu0 0
    %1468 = vmatpush1.bf16.msra.mxu0 0
    %1469 = vmatprep.subr.bf16.mxu0 0
    %1470 = vmatpush1.bf16.msra.mxu0 0
    %1471 = vmatprep.subr.bf16.mxu0 0
    %1472 = vmatpush1.bf16.msra.mxu0 0
    %1473 = vmatprep.subr.bf16.mxu0 0
    %1474 = vmatpush1.bf16.msra.mxu0 0
    %1475 = vmatprep.subr.bf16.mxu0 0
    %1476 = vmatpush1.bf16.msra.mxu0 0
    %1477 = vmatprep.subr.bf16.mxu0 0
    %1478 = vmatpush1.bf16.msra.mxu0 0
    %1479 = vmatprep.subr.bf16.mxu0 0
    %1480 = vmatpush1.bf16.msra.mxu0 0
    %1481 = vmatprep.subr.bf16.mxu0 0
    %1482 = vmatpush1.bf16.msra.mxu0 0
    %1483 = vmatprep.subr.bf16.mxu0 0
    %1484 = vmatpush1.bf16.msra.mxu0 0
    %1485 = vmatprep.subr.bf16.mxu0 0
    %1486 = vmatpush1.bf16.msra.mxu0 0
    %1487 = vmatprep.subr.bf16.mxu0 0
    %1488 = vmatpush1.bf16.msra.mxu0 0
    %1489 = vmatprep.mubr.bf16.mxu0 0
    %1490 = vmatmul.mubr.bf16.gmra.mrb[0].mxu0 %v1446
    %v1491 = vpop.f32.mrb[0].mxu0
    %v1492 = vadd.f32 %v1431, %v1491
    %v1493 = vpop.f32.mrb[0].mxu0
    %v1494 = vpop.f32.mrb[0].mxu0
    %v1495 = vadd.f32 %v1431, %v1494
    %v1496 = vpop.f32.mrb[0].mxu0
    %1497 = vmatprep.mubr.bf16.mxu0 0
    %1498 = vmatmul.mubr.bf16.gmra.mrb[0].mxu0 %v1449
    %v1499 = vpop.f32.mrb[0].mxu0
    %v1500 = vadd.f32 %v1431, %v1499
    %v1501 = vpop.f32.mrb[0].mxu0
    %v1502 = vpop.f32.mrb[0].mxu0
    %v1503 = vadd.f32 %v1431, %v1502
    %v1504 = vpop.f32.mrb[0].mxu0
    %1505 = vmatprep.mubr.bf16.mxu0 0
    %1506 = vmatmul.mubr.bf16.gmra.mrb[0].mxu0 %v1452
    %v1507 = vpop.f32.mrb[0].mxu0
    %v1508 = vadd.f32 %v1431, %v1507
    %v1509 = vpop.f32.mrb[0].mxu0
    %v1510 = vpop.f32.mrb[0].mxu0
    %v1511 = vadd.f32 %v1431, %v1510
    %v1512 = vpop.f32.mrb[0].mxu0
    %1513 = vmatprep.mubr.bf16.mxu0 0
    %1514 = vmatmul.mubr.bf16.gmra.mrb[0].mxu0 %v1455
    %v1515 = vpop.f32.mrb[0].mxu0
    %v1516 = vadd.f32 %v1431, %v1515
    %v1517 = vpop.f32.mrb[0].mxu0
    %v1518 = vpop.f32.mrb[0].mxu0
    %v1519 = vadd.f32 %v1431, %v1518
    %v1520 = vpop.f32.mrb[0].mxu0
    %1521 = vdwg.mxu0
    %v1522 = vmax.f32 %v1492, 0.0
    %v1523 = vmax.f32 %v1495, 0.0
    %v1524 = vmax.f32 %v1500, 0.0
    %v1525 = vmax.f32 %v1503, 0.0
    %v1526 = vmax.f32 %v1508, 0.0
    %v1527 = vmax.f32 %v1511, 0.0
    %v1528 = vmax.f32 %v1516, 0.0
    %v1529 = vmax.f32 %v1519, 0.0
    %v1530 = vld [vmem:[%s55] sm:$0xf]
    %v1531 = vld [vmem:[%s55 + $0x4] sm:$0xf]
    %v1532 = vld [vmem:[%s55 + $0x8] sm:$0xf]
    %v1533 = vld [vmem:[%s55 + $0xc] sm:$0xf]
    %v1534 = vpack.c.bf16 %v1523, %v1522
    %v1535 = vpack.c.bf16 %v1525, %v1524
    %v1536 = vpack.c.bf16 %v1527, %v1526
    %v1537 = vpack.c.bf16 %v1529, %v1528
    %v1538 = vld [vmem:[%s57] sm:$0x1]
    %v1540 = vlaneseq
    %v1541 = vshrl.u32 %v1540, 7
    %v1542 = vsub.s32 0, %v1541
    %v1543 = vrot.slane %v1538, %v1542
    %v1549 = vunpack.c.l.b16 %v1530
    %v1550 = vunpack.c.l.b16 %v1531
    %v1551 = vunpack.c.l.b16 %v1532
    %v1552 = vunpack.c.l.b16 %v1533
    %v1553 = vpack.c.b16 %v1550, %v1549
    %v1554 = vpack.c.b16 %v1552, %v1551
    %v1558 = vsel %vm246, %v1534, 0
    %v1561 = vsel %vm246, %v1535, 0
    %v1564 = vsel %vm246, %v1536, 0
    %v1567 = vsel %vm246, %v1537, 0
    %1569 = vmatprep.subr.bf16.mxu0 0
    %1570 = vmatpush1.bf16.msra.mxu0 %v1553
    %1571 = vmatprep.subr.bf16.mxu0 0
    %1572 = vmatpush1.bf16.msra.mxu0 %v1554
    %1573 = vmatprep.subr.bf16.mxu0 0
    %1574 = vmatpush1.bf16.msra.mxu0 0
    %1575 = vmatprep.subr.bf16.mxu0 0
    %1576 = vmatpush1.bf16.msra.mxu0 0
    %1577 = vmatprep.subr.bf16.mxu0 0
    %1578 = vmatpush1.bf16.msra.mxu0 0
    %1579 = vmatprep.subr.bf16.mxu0 0
    %1580 = vmatpush1.bf16.msra.mxu0 0
    %1581 = vmatprep.subr.bf16.mxu0 0
    %1582 = vmatpush1.bf16.msra.mxu0 0
    %1583 = vmatprep.subr.bf16.mxu0 0
    %1584 = vmatpush1.bf16.msra.mxu0 0
    %1585 = vmatprep.subr.bf16.mxu0 0
    %1586 = vmatpush1.bf16.msra.mxu0 0
    %1587 = vmatprep.subr.bf16.mxu0 0
    %1588 = vmatpush1.bf16.msra.mxu0 0
    %1589 = vmatprep.subr.bf16.mxu0 0
    %1590 = vmatpush1.bf16.msra.mxu0 0
    %1591 = vmatprep.subr.bf16.mxu0 0
    %1592 = vmatpush1.bf16.msra.mxu0 0
    %1593 = vmatprep.subr.bf16.mxu0 0
    %1594 = vmatpush1.bf16.msra.mxu0 0
    %1595 = vmatprep.subr.bf16.mxu0 0
    %1596 = vmatpush1.bf16.msra.mxu0 0
    %1597 = vmatprep.subr.bf16.mxu0 0
    %1598 = vmatpush1.bf16.msra.mxu0 0
    %1599 = vmatprep.subr.bf16.mxu0 0
    %1600 = vmatpush1.bf16.msra.mxu0 0
    %1601 = vmatprep.mubr.bf16.mxu0 0
    %1602 = vmatmul.mubr.bf16.gmra.mrb[0].mxu0 %v1558
    %v1603 = vpop.f32.mrb[0].mxu0
    %v1604 = vadd.f32 %v1543, %v1603
    %v1605 = vpop.f32.mrb[0].mxu0
    %v1606 = vpop.f32.mrb[0].mxu0
    %v1607 = vadd.f32 %v1543, %v1606
    %v1608 = vpop.f32.mrb[0].mxu0
    %1609 = vmatprep.mubr.bf16.mxu0 0
    %1610 = vmatmul.mubr.bf16.gmra.mrb[0].mxu0 %v1561
    %v1611 = vpop.f32.mrb[0].mxu0
    %v1612 = vadd.f32 %v1543, %v1611
    %v1613 = vpop.f32.mrb[0].mxu0
    %v1614 = vpop.f32.mrb[0].mxu0
    %v1615 = vadd.f32 %v1543, %v1614
    %v1616 = vpop.f32.mrb[0].mxu0
    %1617 = vmatprep.mubr.bf16.mxu0 0
    %1618 = vmatmul.mubr.bf16.gmra.mrb[0].mxu0 %v1564
    %v1619 = vpop.f32.mrb[0].mxu0
    %v1620 = vadd.f32 %v1543, %v1619
    %v1621 = vpop.f32.mrb[0].mxu0
    %v1622 = vpop.f32.mrb[0].mxu0
    %v1623 = vadd.f32 %v1543, %v1622
    %v1624 = vpop.f32.mrb[0].mxu0
    %1625 = vmatprep.mubr.bf16.mxu0 0
    %1626 = vmatmul.mubr.bf16.gmra.mrb[0].mxu0 %v1567
    %v1627 = vpop.f32.mrb[0].mxu0
    %v1628 = vadd.f32 %v1543, %v1627
    %v1629 = vpop.f32.mrb[0].mxu0
    %v1630 = vpop.f32.mrb[0].mxu0
    %v1631 = vadd.f32 %v1543, %v1630
    %v1632 = vpop.f32.mrb[0].mxu0
    %1633 = vdwg.mxu0
    %vm1634 = vcmp.lt.s32.totalorder %v578, 64
    %v1635 = vmax.f32 %v1604, 0.0
    %v1636 = vmax.f32 %v1607, 0.0
    %v1637 = vmax.f32 %v1612, 0.0
    %v1638 = vmax.f32 %v1615, 0.0
    %v1639 = vmax.f32 %v1620, 0.0
    %v1640 = vmax.f32 %v1623, 0.0
    %v1641 = vmax.f32 %v1628, 0.0
    %v1642 = vmax.f32 %v1631, 0.0
    %vm1643 = vcmp.ne.f32.partialorder %v1604, %v1604
    %vm1644 = vcmp.ne.f32.partialorder %v1607, %v1607
    %vm1645 = vcmp.ne.f32.partialorder %v1612, %v1612
    %vm1646 = vcmp.ne.f32.partialorder %v1615, %v1615
    %vm1647 = vcmp.ne.f32.partialorder %v1620, %v1620
    %vm1648 = vcmp.ne.f32.partialorder %v1623, %v1623
    %vm1649 = vcmp.ne.f32.partialorder %v1628, %v1628
    %vm1650 = vcmp.ne.f32.partialorder %v1631, %v1631
    %v1651 = vadd.f32 %v1604, 0.0
    %v1652 = vadd.f32 %v1607, 0.0
    %v1653 = vadd.f32 %v1612, 0.0
    %v1654 = vadd.f32 %v1615, 0.0
    %v1655 = vadd.f32 %v1620, 0.0
    %v1656 = vadd.f32 %v1623, 0.0
    %v1657 = vadd.f32 %v1628, 0.0
    %v1658 = vadd.f32 %v1631, 0.0
    %v1659 = vand.u32 2147483647, %v1604
    %v1660 = vand.u32 2147483647, %v1607
    %v1661 = vand.u32 2147483647, %v1612
    %v1662 = vand.u32 2147483647, %v1615
    %v1663 = vand.u32 2147483647, %v1620
    %v1664 = vand.u32 2147483647, %v1623
    %v1665 = vand.u32 2147483647, %v1628
    %v1666 = vand.u32 2147483647, %v1631
    %v1667 = vsub.f32 0.0, %v1659
    %v1668 = vsub.f32 0.0, %v1660
    %v1669 = vsub.f32 0.0, %v1661
    %v1670 = vsub.f32 0.0, %v1662
    %v1671 = vsub.f32 0.0, %v1663
    %v1672 = vsub.f32 0.0, %v1664
    %v1673 = vsub.f32 0.0, %v1665
    %v1674 = vsub.f32 0.0, %v1666
    %v1675 = vmul.f32 %v1667, 1.442695
    %v1676 = vpow.pop %v1675
    %v1677 = vmul.f32 %v1668, 1.442695
    %v1678 = vpow.pop %v1677
    %v1679 = vmul.f32 %v1669, 1.442695
    %v1680 = vpow.pop %v1679
    %v1681 = vmul.f32 %v1670, 1.442695
    %v1682 = vpow.pop %v1681
    %v1683 = vmul.f32 %v1671, 1.442695
    %v1684 = vpow.pop %v1683
    %v1685 = vmul.f32 %v1672, 1.442695
    %v1686 = vpow.pop %v1685
    %v1687 = vmul.f32 %v1673, 1.442695
    %v1688 = vpow.pop %v1687
    %v1689 = vmul.f32 %v1674, 1.442695
    %v1690 = vpow.pop %v1689
    %v1691 = vadd.f32 %v1676, 1.0
    %v1692 = vlog2.pop %v1691
    %v1693 = vmul.f32 %v1692, 0.6931472
    %v1694 = vmul.f32 -0.5, %v1676
    %v1695 = vadd.f32 %v1694, 1.0
    %v1696 = vmul.f32 %v1695, %v1676
    %v1697 = vand.u32 2147483647, %v1676
    %vm1698 = vcmp.lt.f32.partialorder %v1697, 0.0004427343
    %v1699 = vsel %vm1698, %v1696, %v1693
    %v1700 = vadd.f32 %v1678, 1.0
    %v1701 = vlog2.pop %v1700
    %v1702 = vmul.f32 %v1701, 0.6931472
    %v1703 = vmul.f32 -0.5, %v1678
    %v1704 = vadd.f32 %v1703, 1.0
    %v1705 = vmul.f32 %v1704, %v1678
    %v1706 = vand.u32 2147483647, %v1678
    %vm1707 = vcmp.lt.f32.partialorder %v1706, 0.0004427343
    %v1708 = vsel %vm1707, %v1705, %v1702
    %v1709 = vadd.f32 %v1680, 1.0
    %v1710 = vlog2.pop %v1709
    %v1711 = vmul.f32 %v1710, 0.6931472
    %v1712 = vmul.f32 -0.5, %v1680
    %v1713 = vadd.f32 %v1712, 1.0
    %v1714 = vmul.f32 %v1713, %v1680
    %v1715 = vand.u32 2147483647, %v1680
    %vm1716 = vcmp.lt.f32.partialorder %v1715, 0.0004427343
    %v1717 = vsel %vm1716, %v1714, %v1711
    %v1718 = vadd.f32 %v1682, 1.0
    %v1719 = vlog2.pop %v1718
    %v1720 = vmul.f32 %v1719, 0.6931472
    %v1721 = vmul.f32 -0.5, %v1682
    %v1722 = vadd.f32 %v1721, 1.0
    %v1723 = vmul.f32 %v1722, %v1682
    %v1724 = vand.u32 2147483647, %v1682
    %vm1725 = vcmp.lt.f32.partialorder %v1724, 0.0004427343
    %v1726 = vsel %vm1725, %v1723, %v1720
    %v1727 = vadd.f32 %v1684, 1.0
    %v1728 = vlog2.pop %v1727
    %v1729 = vmul.f32 %v1728, 0.6931472
    %v1730 = vmul.f32 -0.5, %v1684
    %v1731 = vadd.f32 %v1730, 1.0
    %v1732 = vmul.f32 %v1731, %v1684
    %v1733 = vand.u32 2147483647, %v1684
    %vm1734 = vcmp.lt.f32.partialorder %v1733, 0.0004427343
    %v1735 = vsel %vm1734, %v1732, %v1729
    %v1736 = vadd.f32 %v1686, 1.0
    %v1737 = vlog2.pop %v1736
    %v1738 = vmul.f32 %v1737, 0.6931472
    %v1739 = vmul.f32 -0.5, %v1686
    %v1740 = vadd.f32 %v1739, 1.0
    %v1741 = vmul.f32 %v1740, %v1686
    %v1742 = vand.u32 2147483647, %v1686
    %vm1743 = vcmp.lt.f32.partialorder %v1742, 0.0004427343
    %v1744 = vsel %vm1743, %v1741, %v1738
    %v1745 = vadd.f32 %v1688, 1.0
    %v1746 = vlog2.pop %v1745
    %v1747 = vmul.f32 %v1746, 0.6931472
    %v1748 = vmul.f32 -0.5, %v1688
    %v1749 = vadd.f32 %v1748, 1.0
    %v1750 = vmul.f32 %v1749, %v1688
    %v1751 = vand.u32 2147483647, %v1688
    %vm1752 = vcmp.lt.f32.partialorder %v1751, 0.0004427343
    %v1753 = vsel %vm1752, %v1750, %v1747
    %v1754 = vadd.f32 %v1690, 1.0
    %v1755 = vlog2.pop %v1754
    %v1756 = vmul.f32 %v1755, 0.6931472
    %v1757 = vmul.f32 -0.5, %v1690
    %v1758 = vadd.f32 %v1757, 1.0
    %v1759 = vmul.f32 %v1758, %v1690
    %v1760 = vand.u32 2147483647, %v1690
    %vm1761 = vcmp.lt.f32.partialorder %v1760, 0.0004427343
    %v1762 = vsel %vm1761, %v1759, %v1756
    %v1763 = vadd.f32 %v1635, %v1699
    %v1764 = vadd.f32 %v1636, %v1708
    %v1765 = vadd.f32 %v1637, %v1717
    %v1766 = vadd.f32 %v1638, %v1726
    %v1767 = vadd.f32 %v1639, %v1735
    %v1768 = vadd.f32 %v1640, %v1744
    %v1769 = vadd.f32 %v1641, %v1753
    %v1770 = vadd.f32 %v1642, %v1762
    %v1771 = vsel %vm1643, %v1651, %v1763
    %v1772 = vsel %vm1644, %v1652, %v1764
    %v1773 = vsel %vm1645, %v1653, %v1765
    %v1774 = vsel %vm1646, %v1654, %v1766
    %v1775 = vsel %vm1647, %v1655, %v1767
    %v1776 = vsel %vm1648, %v1656, %v1768
    %v1777 = vsel %vm1649, %v1657, %v1769
    %v1778 = vsel %vm1650, %v1658, %v1770
    %v1779 = vsel %vm1634, %v1604, %v1771
    %v1780 = vsel %vm1634, %v1607, %v1772
    %v1781 = vsel %vm1634, %v1612, %v1773
    %v1782 = vsel %vm1634, %v1615, %v1774
    %v1783 = vsel %vm1634, %v1620, %v1775
    %v1784 = vsel %vm1634, %v1623, %v1776
    %v1785 = vsel %vm1634, %v1628, %v1777
    %v1786 = vsel %vm1634, %v1631, %v1778
    %1787 = vst [vmem:[%s69] sm:$0xff] %v1779
    %1788 = vst [vmem:[%s69 + $0x8] sm:$0xff] %v1780
    %1789 = vst [vmem:[%s69 + $0x10] sm:$0xff] %v1781
    %1790 = vst [vmem:[%s69 + $0x18] sm:$0xff] %v1782
    %1791 = vst [vmem:[%s69 + $0x20] sm:$0xff] %v1783
    %1792 = vst [vmem:[%s69 + $0x28] sm:$0xff] %v1784
    %1793 = vst [vmem:[%s69 + $0x30] sm:$0xff] %v1785
    %1794 = vst [vmem:[%s69 + $0x38] sm:$0xff] %v1786
    // Predicated region
    $region118: #{gmvae_forward.1} parent=1 // pred_check
      _
    $region119: #{gmvae_forward.1} parent=1 // pred_check_branch
      %1796 = sbr.rel (0) target = $region121
    $region120: #{gmvae_forward.1} parent=1 // pred_region
      %s1798 = ssub.s32 128, 128
      %1799 = vsyncadd [#allocation3], %s1798
      %s1801 = sshll.u32 [#allocation2], 4
      %s1802 = int_to_ptr.vmem [resolvable:$true] %s1801
      %1804 = dma.vmem_to_hbm [thread:$0]  %s1802, 128, %s59, [#allocation3]
    $region121: #{gmvae_forward.1} parent=1 // pred_fallthru
      _
    // Predicated region
    $region122: #{gmvae_forward.1} parent=1 // pred_check
      _
    $region123: #{gmvae_forward.1} parent=1 // pred_check_branch
      %1806 = sbr.rel (0) target = $region125
    $region124: #{gmvae_forward.1} parent=1 // pred_region
      %s1808 = ssub.s32 128, 128
      %1809 = vsyncadd [#allocation5], %s1808
      %s1811 = sshll.u32 [#allocation4], 4
      %s1812 = int_to_ptr.vmem [resolvable:$true] %s1811
      %1814 = dma.vmem_to_hbm [thread:$0]  %s1812, 128, %s61, [#allocation5]
    $region125: #{gmvae_forward.1} parent=1 // pred_fallthru
      _
    // Predicated region
    $region126: #{gmvae_forward.1} parent=1 // pred_check
      _
    $region127: #{gmvae_forward.1} parent=1 // pred_check_branch
      %1816 = sbr.rel (0) target = $region129
    $region128: #{gmvae_forward.1} parent=1 // pred_region
      _
    $region129: #{gmvae_forward.1} parent=1 // pred_fallthru
      _
    // Predicated region
    $region130: #{gmvae_forward.1} parent=1 // pred_check
      _
    $region131: #{gmvae_forward.1} parent=1 // pred_check_branch
      %1818 = sbr.rel (0) target = $region133
    $region132: #{gmvae_forward.1} parent=1 // pred_region
      %s1820 = ssub.s32 1024, 1024
      %1821 = vsyncadd [#allocation5], %s1820
      %s1822 = sshll.u32 [#allocation6], 4
      %s1823 = int_to_ptr.vmem [resolvable:$true] %s1822
      %1828 = dma.vmem_to_hbm [thread:$0]  %s1823, 1024, %s65, [#allocation5], 128, 128, 8
    $region133: #{gmvae_forward.1} parent=1 // pred_fallthru
      _
    // Predicated region
    $region134: #{gmvae_forward.1} parent=1 // pred_check
      _
    $region135: #{gmvae_forward.1} parent=1 // pred_check_branch
      %1830 = sbr.rel (0) target = $region137
    $region136: #{gmvae_forward.1} parent=1 // pred_region
      _
    $region137: #{gmvae_forward.1} parent=1 // pred_fallthru
      _
    // Predicated region
    $region138: #{gmvae_forward.1} parent=1 // pred_check
      _
    $region139: #{gmvae_forward.1} parent=1 // pred_check_branch
      %1832 = sbr.rel (0) target = $region141
    $region140: #{gmvae_forward.1} parent=1 // pred_region
      _
    $region141: #{gmvae_forward.1} parent=1 // pred_fallthru
      _
    // Predicated region
    $region142: #{gmvae_forward.1} parent=1 // pred_check
      _
    $region143: #{gmvae_forward.1} parent=1 // pred_check_branch
      %1834 = sbr.rel (0) target = $region145
    $region144: #{gmvae_forward.1} parent=1 // pred_region
      %1835 = dma.done [#allocation3], 128
    $region145: #{gmvae_forward.1} parent=1 // pred_fallthru
      _
    // Predicated region
    $region146: #{gmvae_forward.1} parent=1 // pred_check
      _
    $region147: #{gmvae_forward.1} parent=1 // pred_check_branch
      %1837 = sbr.rel (0) target = $region149
    $region148: #{gmvae_forward.1} parent=1 // pred_region
      %1838 = dma.done [#allocation5], 128
    $region149: #{gmvae_forward.1} parent=1 // pred_fallthru
      _
    // Predicated region
    $region150: #{gmvae_forward.1} parent=1 // pred_check
      _
    $region151: #{gmvae_forward.1} parent=1 // pred_check_branch
      %1840 = sbr.rel (0) target = $region153
    $region152: #{gmvae_forward.1} parent=1 // pred_region
      _
    $region153: #{gmvae_forward.1} parent=1 // pred_fallthru
      _
    // Predicated region
    $region154: #{gmvae_forward.1} parent=1 // pred_check
      _
    $region155: #{gmvae_forward.1} parent=1 // pred_check_branch
      %1842 = sbr.rel (0) target = $region157
    $region156: #{gmvae_forward.1} parent=1 // pred_region
      %1843 = dma.done [#allocation5], 1024
    $region157: #{gmvae_forward.1} parent=1 // pred_fallthru
      _
    // Predicated region
    $region158: #{gmvae_forward.1} parent=1 // pred_check
      _
    $region159: #{gmvae_forward.1} parent=1 // pred_check_branch
      %1845 = sbr.rel (0) target = $region161
    $region160: #{gmvae_forward.1} parent=1 // pred_region
      _
    $region161: #{gmvae_forward.1} parent=1 // pred_fallthru
      _
    // Predicated region
    $region162: #{gmvae_forward.1} parent=1 // pred_check
      _
    $region163: #{gmvae_forward.1} parent=1 // pred_check_branch
      %1847 = sbr.rel (0) target = $region165
    $region164: #{gmvae_forward.1} parent=1 // pred_region
      _
    $region165: #{gmvae_forward.1} parent=1 // pred_fallthru
      _
    %1848 = vsyncpa [#allocation3], 1
    %1849 = vsyncpa [#allocation5], 1

</llo_original>
